<compile_context>
chip_gen: v5e
topology: v5e:2x2
jax: 0.10.0
libtpu: 0.0.40
codegen_flags: <defaults>
</compile_context>

<pallas_src>
import jax
import jax.numpy as jnp
from jax.experimental import pallas as pl
from jax.experimental.pallas import tpu as pltpu

IN_FEATURES = 512      # already a multiple of 128
HIDDEN = 350
OUT_FEATURES = 200
HIDDEN_PAD = 384       # 350 -> 3*128 (lane-dense)
OUT_PAD = 256          # 200 -> 2*128 (lane-dense, unmasked stores)
MAX_BATCH_TILE = 512   # caps per-step VMEM, enables software pipelining


def _round_up(x, m):
    return (x + m - 1) // m * m


def _mlp_kernel(x_ref, w1_ref, b1_ref, w2_ref, b2_ref, w3_ref, b3_ref, o_ref):
    # fc1 + ReLU  (bf16 MXU operands, f32 accumulation)
    h1 = jnp.dot(x_ref[...], w1_ref[...], preferred_element_type=jnp.float32)
    h1 = jnp.maximum(h1 + b1_ref[...], 0.0)
    # fc2 + ReLU
    h2 = jnp.dot(h1.astype(jnp.bfloat16), w2_ref[...],
                 preferred_element_type=jnp.float32)
    h2 = jnp.maximum(h2 + b2_ref[...], 0.0)
    # out (no activation)
    y = jnp.dot(h2.astype(jnp.bfloat16), w3_ref[...],
                preferred_element_type=jnp.float32) + b3_ref[...]
    o_ref[...] = y.astype(o_ref.dtype)


def _pad2d(a, rows, cols):
    return jnp.pad(a, ((0, rows - a.shape[0]), (0, cols - a.shape[1])))


def prepare_params(params):
    """Zero-pad (in,out)/(1,out) f32 params to lane multiples; weights -> bf16."""
    w1, b1, w2, b2, w3, b3 = params
    w1p = _pad2d(w1, IN_FEATURES, HIDDEN_PAD).astype(jnp.bfloat16)
    w2p = _pad2d(w2, HIDDEN_PAD, HIDDEN_PAD).astype(jnp.bfloat16)
    w3p = _pad2d(w3, HIDDEN_PAD, OUT_PAD).astype(jnp.bfloat16)
    b1p = _pad2d(b1, 1, HIDDEN_PAD).astype(jnp.float32)
    b2p = _pad2d(b2, 1, HIDDEN_PAD).astype(jnp.float32)
    b3p = _pad2d(b3, 1, OUT_PAD).astype(jnp.float32)
    return (w1p, b1p, w2p, b2p, w3p, b3p)


def feature_classifier_forward(x, params):
    """x: any shape (B, ...) with prod(...) == 512. Returns (B, 200) float32."""
    b = x.shape[0]
    x2d = x.reshape(b, -1)
    assert x2d.shape[1] == IN_FEATURES, (
        f"expected {IN_FEATURES} features, got {x2d.shape[1]}")

    w1p, b1p, w2p, b2p, w3p, b3p = prepare_params(params)

    # Batch tiling: TB multiple of 8 (sublane), capped so per-step VMEM stays
    # small (~0.5 MiB x tile + ~0.5 MiB out tile + ~0.9 MiB bf16 weights,
    # with x/out double-buffered by the pipeline).
    tb = min(MAX_BATCH_TILE, _round_up(b, 8))
    b_pad = _round_up(b, tb)
    x2d = jnp.pad(x2d, ((0, b_pad - b), (0, 0))).astype(jnp.bfloat16)
    n_tiles = b_pad // tb

    def resident(shape):
        # Full-array block, same block index every grid step -> stays in VMEM.
        return pl.BlockSpec(shape, lambda i: (0,) * len(shape))

    flops = 2 * b_pad * (IN_FEATURES * HIDDEN_PAD
                         + HIDDEN_PAD * HIDDEN_PAD
                         + HIDDEN_PAD * OUT_PAD)
    bytes_accessed = (x2d.size * 2
                      + (w1p.size + w2p.size + w3p.size) * 2
                      + (b1p.size + b2p.size + b3p.size) * 4
                      + b_pad * OUT_PAD * 4)

    out = pl.pallas_call(
        _mlp_kernel,
        out_shape=jax.ShapeDtypeStruct((b_pad, OUT_PAD), jnp.float32),
        grid_spec=pltpu.PrefetchScalarGridSpec(
            num_scalar_prefetch=0,
            grid=(n_tiles,),
            in_specs=[
                pl.BlockSpec((tb, IN_FEATURES), lambda i: (i, 0)),   # x tile
                resident(w1p.shape), resident(b1p.shape),            # weights stay put
                resident(w2p.shape), resident(b2p.shape),
                resident(w3p.shape), resident(b3p.shape),
            ],
            out_specs=pl.BlockSpec((tb, OUT_PAD), lambda i: (i, 0)),
        ),
        compiler_params=pltpu.CompilerParams(
            dimension_semantics=("parallel",)),
        cost_estimate=pl.CostEstimate(flops=flops, transcendentals=0,
                                      bytes_accessed=bytes_accessed),
    )(x2d, w1p, b1p, w2p, b2p, w3p, b3p)

    return out[:b, :OUT_FEATURES]


def init_params(key):
    """Deterministic synthetic parameters matching nn.Linear shapes.

    PyTorch stores Linear weight as (out, in); we generate in that convention
    and transpose to (in, out) for the kernel so semantics (x @ W.T + b) match.
    """
    ks = jax.random.split(key, 6)
    scale = 0.05

    def linear(kw, kb, in_f, out_f):
        w_pt = scale * jax.random.normal(kw, (out_f, in_f), dtype=jnp.float32)
        b_pt = scale * jax.random.normal(kb, (out_f,), dtype=jnp.float32)
        return w_pt.T, b_pt.reshape(1, out_f)  # kernel layout: (in, out), (1, out)

    w1, b1 = linear(ks[0], ks[1], IN_FEATURES, HIDDEN)
    w2, b2 = linear(ks[2], ks[3], HIDDEN, HIDDEN)
    w3, b3 = linear(ks[4], ks[5], HIDDEN, OUT_FEATURES)
    return (w1, b1, w2, b2, w3, b3)


def reference_forward_f32(x, params):
    """Pure-JAX f32 reference replicating the PyTorch forward exactly."""
    w1, b1, w2, b2, w3, b3 = params
    h = x.reshape(x.shape[0], -1).astype(jnp.float32)
    h = jnp.maximum(h @ w1 + b1, 0.0)
    h = jnp.maximum(h @ w2 + b2, 0.0)
    return h @ w3 + b3


def reference_forward_bf16(x, params):
    """Same forward with bf16 matmul operands + f32 accumulation (kernel's math)."""
    w1, b1, w2, b2, w3, b3 = params
    bf = jnp.bfloat16
    h = x.reshape(x.shape[0], -1).astype(bf)
    h = jnp.maximum(
        jnp.dot(h, w1.astype(bf), preferred_element_type=jnp.float32) + b1, 0.0)
    h = jnp.maximum(
        jnp.dot(h.astype(bf), w2.astype(bf), preferred_element_type=jnp.float32) + b2, 0.0)
    return jnp.dot(h.astype(bf), w3.astype(bf),
                   preferred_element_type=jnp.float32) + b3


if __name__ == "__main__":
    key = jax.random.PRNGKey(0)
    k_x, k_p = jax.random.split(key)

    # NCHW input with C*H*W = 2*16*16 = 512, batch = 8.
    # (At B=8 the kernel is latency-bound; real deployments should batch more.)
    x = jax.random.normal(k_x, (8, 2, 16, 16), dtype=jnp.float32)
    params = init_params(k_p)

    out = feature_classifier_forward(x, params)
    out = jax.block_until_ready(out)
    assert out.shape == (8, OUT_FEATURES)

    # Tight check vs a bf16-operand reference (same math as the kernel).
    ref_bf16 = reference_forward_bf16(x, params)
    assert jnp.allclose(out, ref_bf16, atol=1e-3, rtol=1e-3), "mismatch vs bf16 reference"

    # Looser sanity check vs the exact f32 PyTorch-equivalent forward.
    ref_f32 = reference_forward_f32(x, params)
    assert jnp.allclose(out, ref_f32, atol=5e-2, rtol=5e-2), "mismatch vs f32 reference"

    print("KERNEL_OK")
</pallas_src>

<mosaic_0001>
module attributes {stable_mosaic.version = 11 : i64} {
  func.func @_mlp_kernel(%arg0: i32, %arg1: memref<8x512xbf16, #tpu.memory_space<vmem>>, %arg2: memref<512x384xbf16, #tpu.memory_space<vmem>>, %arg3: memref<1x384xf32, #tpu.memory_space<vmem>>, %arg4: memref<384x384xbf16, #tpu.memory_space<vmem>>, %arg5: memref<1x384xf32, #tpu.memory_space<vmem>>, %arg6: memref<384x256xbf16, #tpu.memory_space<vmem>>, %arg7: memref<1x256xf32, #tpu.memory_space<vmem>>, %arg8: memref<8x256xf32, #tpu.memory_space<vmem>>) attributes {dimension_semantics = [#tpu.dimension_semantics<parallel>], iteration_bounds = array<i64: 1>, scalar_prefetch = 0 : i64, scratch_operands = 0 : i64, tpu.core_type = #tpu.core_type<tc>, window_params = [{transform_indices = @transform_0, window_bounds = array<i64: 8, 512>}, {pipeline_mode = #tpu.pipeline_mode<synchronous>, transform_indices = @transform_1, window_bounds = array<i64: 512, 384>}, {pipeline_mode = #tpu.pipeline_mode<synchronous>, transform_indices = @transform_2, window_bounds = array<i64: 1, 384>}, {pipeline_mode = #tpu.pipeline_mode<synchronous>, transform_indices = @transform_3, window_bounds = array<i64: 384, 384>}, {pipeline_mode = #tpu.pipeline_mode<synchronous>, transform_indices = @transform_4, window_bounds = array<i64: 1, 384>}, {pipeline_mode = #tpu.pipeline_mode<synchronous>, transform_indices = @transform_5, window_bounds = array<i64: 384, 256>}, {pipeline_mode = #tpu.pipeline_mode<synchronous>, transform_indices = @transform_6, window_bounds = array<i64: 1, 256>}, {transform_indices = @transform_7, window_bounds = array<i64: 8, 256>}]} {
    %c0 = arith.constant 0 : index
    %c0_0 = arith.constant 0 : index
    %0 = vector.load %arg1[%c0, %c0_0] : memref<8x512xbf16, #tpu.memory_space<vmem>>, vector<8x512xbf16>
    %c0_1 = arith.constant 0 : index
    %c0_2 = arith.constant 0 : index
    %1 = vector.load %arg2[%c0_1, %c0_2] : memref<512x384xbf16, #tpu.memory_space<vmem>>, vector<512x384xbf16>
    %cst = arith.constant dense<0.000000e+00> : vector<8x384xf32>
    %2 = tpu.matmul %0, %1, %cst {dimension_numbers = #tpu.dot_dimension_numbers<[1], [0], [0], [1], [0, 0, 1, 1], [], []>} : vector<8x512xbf16>, vector<512x384xbf16>, vector<8x384xf32> -> vector<8x384xf32>
    %c0_3 = arith.constant 0 : index
    %c0_4 = arith.constant 0 : index
    %3 = vector.load %arg3[%c0_3, %c0_4] : memref<1x384xf32, #tpu.memory_space<vmem>>, vector<1x384xf32>
    %4 = vector.broadcast %3 : vector<1x384xf32> to vector<8x384xf32>
    %5 = arith.addf %2, %4 : vector<8x384xf32>
    %cst_5 = arith.constant 0.000000e+00 : f32
    %6 = vector.broadcast %cst_5 : f32 to vector<8x384xf32>
    %7 = arith.maximumf %5, %6 : vector<8x384xf32>
    %8 = arith.truncf %7 : vector<8x384xf32> to vector<8x384xbf16>
    %c0_6 = arith.constant 0 : index
    %c0_7 = arith.constant 0 : index
    %9 = vector.load %arg4[%c0_6, %c0_7] : memref<384x384xbf16, #tpu.memory_space<vmem>>, vector<384x384xbf16>
    %cst_8 = arith.constant dense<0.000000e+00> : vector<8x384xf32>
    %10 = tpu.matmul %8, %9, %cst_8 {dimension_numbers = #tpu.dot_dimension_numbers<[1], [0], [0], [1], [0, 0, 1, 1], [], []>} : vector<8x384xbf16>, vector<384x384xbf16>, vector<8x384xf32> -> vector<8x384xf32>
    %c0_9 = arith.constant 0 : index
    %c0_10 = arith.constant 0 : index
    %11 = vector.load %arg5[%c0_9, %c0_10] : memref<1x384xf32, #tpu.memory_space<vmem>>, vector<1x384xf32>
    %12 = vector.broadcast %11 : vector<1x384xf32> to vector<8x384xf32>
    %13 = arith.addf %10, %12 : vector<8x384xf32>
    %cst_11 = arith.constant 0.000000e+00 : f32
    %14 = vector.broadcast %cst_11 : f32 to vector<8x384xf32>
    %15 = arith.maximumf %13, %14 : vector<8x384xf32>
    %16 = arith.truncf %15 : vector<8x384xf32> to vector<8x384xbf16>
    %c0_12 = arith.constant 0 : index
    %c0_13 = arith.constant 0 : index
    %17 = vector.load %arg6[%c0_12, %c0_13] : memref<384x256xbf16, #tpu.memory_space<vmem>>, vector<384x256xbf16>
    %cst_14 = arith.constant dense<0.000000e+00> : vector<8x256xf32>
    %18 = tpu.matmul %16, %17, %cst_14 {dimension_numbers = #tpu.dot_dimension_numbers<[1], [0], [0], [1], [0, 0, 1, 1], [], []>} : vector<8x384xbf16>, vector<384x256xbf16>, vector<8x256xf32> -> vector<8x256xf32>
    %c0_15 = arith.constant 0 : index
    %c0_16 = arith.constant 0 : index
    %19 = vector.load %arg7[%c0_15, %c0_16] : memref<1x256xf32, #tpu.memory_space<vmem>>, vector<1x256xf32>
    %20 = vector.broadcast %19 : vector<1x256xf32> to vector<8x256xf32>
    %21 = arith.addf %18, %20 : vector<8x256xf32>
    %c0_17 = arith.constant 0 : index
    %c0_18 = arith.constant 0 : index
    %22 = vector.load %arg8[%c0_17, %c0_18] : memref<8x256xf32, #tpu.memory_space<vmem>>, vector<8x256xf32>
    tpu.vector_store %arg8[%c0_17, %c0_18], %21 {strides = array<i32>} : memref<8x256xf32, #tpu.memory_space<vmem>>, vector<8x256xf32>,
    return
  }
  func.func @transform_0(%arg0: i32) -> (i32, i32) {
    %c0_i32 = arith.constant 0 : i32
    %c0_i32_0 = arith.constant 0 : i32
    return %arg0, %c0_i32 : i32, i32
  }
  func.func @transform_1(%arg0: i32) -> (i32, i32) {
    %c0_i32 = arith.constant 0 : i32
    %c0_i32_0 = arith.constant 0 : i32
    %c0_i32_1 = arith.constant 0 : i32
    return %c0_i32, %c0_i32_0 : i32, i32
  }
  func.func @transform_2(%arg0: i32) -> (i32, i32) {
    %c0_i32 = arith.constant 0 : i32
    %c0_i32_0 = arith.constant 0 : i32
    %c0_i32_1 = arith.constant 0 : i32
    return %c0_i32, %c0_i32_0 : i32, i32
  }
  func.func @transform_3(%arg0: i32) -> (i32, i32) {
    %c0_i32 = arith.constant 0 : i32
    %c0_i32_0 = arith.constant 0 : i32
    %c0_i32_1 = arith.constant 0 : i32
    return %c0_i32, %c0_i32_0 : i32, i32
  }
  func.func @transform_4(%arg0: i32) -> (i32, i32) {
    %c0_i32 = arith.constant 0 : i32
    %c0_i32_0 = arith.constant 0 : i32
    %c0_i32_1 = arith.constant 0 : i32
    return %c0_i32, %c0_i32_0 : i32, i32
  }
  func.func @transform_5(%arg0: i32) -> (i32, i32) {
    %c0_i32 = arith.constant 0 : i32
    %c0_i32_0 = arith.constant 0 : i32
    %c0_i32_1 = arith.constant 0 : i32
    return %c0_i32, %c0_i32_0 : i32, i32
  }
  func.func @transform_6(%arg0: i32) -> (i32, i32) {
    %c0_i32 = arith.constant 0 : i32
    %c0_i32_0 = arith.constant 0 : i32
    %c0_i32_1 = arith.constant 0 : i32
    return %c0_i32, %c0_i32_0 : i32, i32
  }
  func.func @transform_7(%arg0: i32) -> (i32, i32) {
    %c0_i32 = arith.constant 0 : i32
    %c0_i32_0 = arith.constant 0 : i32
    return %arg0, %c0_i32 : i32, i32
  }
}

</mosaic_0001>

<llo_original>
// kernel: tpu_custom_call.1
$region0: #{tpu_custom_call.1}
  #allocation0 [shape = 'u32[]', space=smem, size = 0x4, offset = 0x4, fixed_abs, tag = 'smem constant byte address 0x4 - core index']
  #allocation1 [shape = 'u32[72,128]{1,0:T(1,128)}', space=vmem, size = 0x9000, scoped, tag = 'internal scratch']
  %s0 = inlined_call_operand.hbm [shape: bf16[8,512], index: 0, kind: input, shape index: {}]
  %s1 = inlined_call_operand.hbm [shape: bf16[512,384], index: 1, kind: input, shape index: {}]
  %s2 = inlined_call_operand.hbm [shape: f32[1,384], index: 2, kind: input, shape index: {}]
  %s3 = inlined_call_operand.hbm [shape: bf16[384,384], index: 3, kind: input, shape index: {}]
  %s4 = inlined_call_operand.vmem [shape: f32[1,384], index: 4, kind: input, shape index: {}]
  %s5 = inlined_call_operand.hbm [shape: bf16[384,256], index: 5, kind: input, shape index: {}]
  %s6 = inlined_call_operand.vmem [shape: f32[1,256], index: 6, kind: input, shape index: {}]
  %s7 = inlined_call_operand.hbm [shape: f32[8,256], index: 7, kind: output, shape index: {}]
  %s8 = sld [smem:[#allocation0]]
  $region58: #{tpu_custom_call.1} parent=0
    _
  %s10 = ssub.s32 1, %s8
  %s11 = scalar_select 0, %s10, %s8
  $region1: #{tpu_custom_call.1} parent=0
    #allocation2 [shape = 'u8[8192]{0}', space=vmem, size = 0x2000, scoped, tag = 'input window, operand 0, single buffered']
    #allocation3 [shape = 's32[1]{0}', space=sflag, size = 0x4, scoped, tag = 'scoped memory for tpu_custom_call.1']
    #allocation4 [shape = 's32[1]{0}', space=sflag, size = 0x4, scoped, tag = 'scoped memory for tpu_custom_call.1']
    #allocation5 [shape = 'u8[393216]{0}', space=vmem, size = 0x60000, scoped, tag = 'input window, operand 1, single buffered']
    #allocation6 [shape = 's32[1]{0}', space=sflag, size = 0x4, scoped, tag = 'scoped memory for tpu_custom_call.1']
    #allocation7 [shape = 'u8[1536]{0}', space=vmem, size = 0x800, scoped, tag = 'input window, operand 2, single buffered']
    #allocation8 [shape = 'u8[294912]{0}', space=vmem, size = 0x48000, scoped, tag = 'input window, operand 3, single buffered']
    #allocation9 [shape = 's32[1]{0}', space=sflag, size = 0x4, scoped, tag = 'scoped memory for tpu_custom_call.1']
    #allocation10 [shape = 'u8[196608]{0}', space=vmem, size = 0x30000, scoped, tag = 'input window, operand 5, single buffered']
    #allocation11 [shape = 'u8[8192]{0}', space=vmem, size = 0x2000, scoped, tag = 'output window, operand 0, single buffered']
    %12 = vsyncpa [#allocation3], 0
    %13 = vsyncpa [#allocation6], 0
    %14 = vsyncpa [#allocation9], 0
    %15 = vsyncpa [#allocation4], 0
    // Predicated region
    $region2: #{tpu_custom_call.1} parent=1 // pred_check
      _
    $region3: #{tpu_custom_call.1} parent=1 // pred_check_branch
      %17 = sbr.rel (0) target = $region5
    $region4: #{tpu_custom_call.1} parent=1 // pred_region
      %19 = vsyncadd [#allocation3], 0
      %s21 = sshll.u32 %s0, 4
      %s22 = int_to_ptr.hbm [resolvable:$true] %s21
      %s23 = sshll.u32 [#allocation2], 4
      %s24 = int_to_ptr.vmem [resolvable:$true] %s23
      %26 = dma.hbm_to_vmem [thread:$0]  %s22, 256, %s24, [#allocation3]
    $region5: #{tpu_custom_call.1} parent=1 // pred_fallthru
      _
    // Predicated region
    $region6: #{tpu_custom_call.1} parent=1 // pred_check
      _
    $region7: #{tpu_custom_call.1} parent=1 // pred_check_branch
      %28 = sbr.rel (0) target = $region9
    $region8: #{tpu_custom_call.1} parent=1 // pred_region
      %30 = vsyncadd [#allocation6], 0
      %s31 = sshll.u32 %s1, 4
      %s32 = int_to_ptr.hbm [resolvable:$true] %s31
      %s33 = sshll.u32 [#allocation5], 4
      %s34 = int_to_ptr.vmem [resolvable:$true] %s33
      %39 = dma.hbm_to_vmem [thread:$0]  %s32, 12288, %s34, [#allocation6], 192, 192, 12
    $region9: #{tpu_custom_call.1} parent=1 // pred_fallthru
      _
    // Predicated region
    $region10: #{tpu_custom_call.1} parent=1 // pred_check
      _
    $region11: #{tpu_custom_call.1} parent=1 // pred_check_branch
      %41 = sbr.rel (0) target = $region13
    $region12: #{tpu_custom_call.1} parent=1 // pred_region
      %43 = vsyncadd [#allocation6], 0
      %s45 = sshll.u32 %s2, 4
      %s46 = int_to_ptr.hbm [resolvable:$true] %s45
      %s47 = sshll.u32 [#allocation7], 4
      %s48 = int_to_ptr.vmem [resolvable:$true] %s47
      %50 = dma.hbm_to_vmem [thread:$0]  %s46, 48, %s48, [#allocation6]
    $region13: #{tpu_custom_call.1} parent=1 // pred_fallthru
      _
    // Predicated region
    $region14: #{tpu_custom_call.1} parent=1 // pred_check
      _
    $region15: #{tpu_custom_call.1} parent=1 // pred_check_branch
      %52 = sbr.rel (0) target = $region17
    $region16: #{tpu_custom_call.1} parent=1 // pred_region
      %54 = vsyncadd [#allocation9], 0
      %s55 = sshll.u32 %s3, 4
      %s56 = int_to_ptr.hbm [resolvable:$true] %s55
      %s57 = sshll.u32 [#allocation8], 4
      %s58 = int_to_ptr.vmem [resolvable:$true] %s57
      %63 = dma.hbm_to_vmem [thread:$0]  %s56, 9216, %s58, [#allocation9], 192, 192, 12
    $region17: #{tpu_custom_call.1} parent=1 // pred_fallthru
      _
    // Predicated region
    $region18: #{tpu_custom_call.1} parent=1 // pred_check
      _
    $region19: #{tpu_custom_call.1} parent=1 // pred_check_branch
      %65 = sbr.rel (0) target = $region21
    $region20: #{tpu_custom_call.1} parent=1 // pred_region
      _
    $region21: #{tpu_custom_call.1} parent=1 // pred_fallthru
      _
    // Predicated region
    $region22: #{tpu_custom_call.1} parent=1 // pred_check
      _
    $region23: #{tpu_custom_call.1} parent=1 // pred_check_branch
      %67 = sbr.rel (0) target = $region25
    $region24: #{tpu_custom_call.1} parent=1 // pred_region
      %69 = vsyncadd [#allocation9], 0
      %s70 = sshll.u32 %s5, 4
      %s71 = int_to_ptr.hbm [resolvable:$true] %s70
      %s72 = sshll.u32 [#allocation10], 4
      %s73 = int_to_ptr.vmem [resolvable:$true] %s72
      %78 = dma.hbm_to_vmem [thread:$0]  %s71, 6144, %s73, [#allocation9], 128, 128, 8
    $region25: #{tpu_custom_call.1} parent=1 // pred_fallthru
      _
    // Predicated region
    $region26: #{tpu_custom_call.1} parent=1 // pred_check
      _
    $region27: #{tpu_custom_call.1} parent=1 // pred_check_branch
      %80 = sbr.rel (0) target = $region29
    $region28: #{tpu_custom_call.1} parent=1 // pred_region
      _
    $region29: #{tpu_custom_call.1} parent=1 // pred_fallthru
      _
    // Predicated region
    $region30: #{tpu_custom_call.1} parent=1 // pred_check
      _
    $region31: #{tpu_custom_call.1} parent=1 // pred_check_branch
      %82 = sbr.rel (0) target = $region33
    $region32: #{tpu_custom_call.1} parent=1 // pred_region
      %84 = dma.done [#allocation3], 256
    $region33: #{tpu_custom_call.1} parent=1 // pred_fallthru
      _
    // Predicated region
    $region34: #{tpu_custom_call.1} parent=1 // pred_check
      _
    $region35: #{tpu_custom_call.1} parent=1 // pred_check_branch
      %86 = sbr.rel (0) target = $region37
    $region36: #{tpu_custom_call.1} parent=1 // pred_region
      %88 = dma.done [#allocation6], 12288
    $region37: #{tpu_custom_call.1} parent=1 // pred_fallthru
      _
    // Predicated region
    $region38: #{tpu_custom_call.1} parent=1 // pred_check
      _
    $region39: #{tpu_custom_call.1} parent=1 // pred_check_branch
      %90 = sbr.rel (0) target = $region41
    $region40: #{tpu_custom_call.1} parent=1 // pred_region
      %92 = dma.done [#allocation6], 48
    $region41: #{tpu_custom_call.1} parent=1 // pred_fallthru
      _
    // Predicated region
    $region42: #{tpu_custom_call.1} parent=1 // pred_check
      _
    $region43: #{tpu_custom_call.1} parent=1 // pred_check_branch
      %94 = sbr.rel (0) target = $region45
    $region44: #{tpu_custom_call.1} parent=1 // pred_region
      %96 = dma.done [#allocation9], 9216
    $region45: #{tpu_custom_call.1} parent=1 // pred_fallthru
      _
    // Predicated region
    $region46: #{tpu_custom_call.1} parent=1 // pred_check
      _
    $region47: #{tpu_custom_call.1} parent=1 // pred_check_branch
      %98 = sbr.rel (0) target = $region49
    $region48: #{tpu_custom_call.1} parent=1 // pred_region
      %100 = dma.done [#allocation9], 6144
    $region49: #{tpu_custom_call.1} parent=1 // pred_fallthru
      _
    %v101 = vld [vmem:[#allocation2] sm:$0xff]
    %v102 = vld [vmem:[#allocation2 + $0x8] sm:$0xff]
    %v103 = vld [vmem:[#allocation5] sm:$0xff]
    %v104 = vld [vmem:[#allocation5 + $0x8] sm:$0xf]
    %v105 = vld [vmem:[#allocation5 + $0xc] sm:$0xff]
    %v106 = vld [vmem:[#allocation5 + $0x14] sm:$0xf]
    %v107 = vld [vmem:[#allocation5 + $0x18] sm:$0xff]
    %v108 = vld [vmem:[#allocation5 + $0x20] sm:$0xf]
    %v109 = vld [vmem:[#allocation5 + $0x24] sm:$0xff]
    %v110 = vld [vmem:[#allocation5 + $0x2c] sm:$0xf]
    %v111 = vld [vmem:[#allocation5 + $0x30] sm:$0xff]
    %v112 = vld [vmem:[#allocation5 + $0x38] sm:$0xf]
    %v113 = vld [vmem:[#allocation5 + $0x3c] sm:$0xff]
    %v114 = vld [vmem:[#allocation5 + $0x44] sm:$0xf]
    %v115 = vld [vmem:[#allocation5 + $0x48] sm:$0xff]
    %v116 = vld [vmem:[#allocation5 + $0x50] sm:$0xf]
    %v117 = vld [vmem:[#allocation5 + $0x54] sm:$0xff]
    %v118 = vld [vmem:[#allocation5 + $0x5c] sm:$0xf]
    %v119 = vld [vmem:[#allocation5 + $0x60] sm:$0xff]
    %v120 = vld [vmem:[#allocation5 + $0x68] sm:$0xf]
    %v121 = vld [vmem:[#allocation5 + $0x6c] sm:$0xff]
    %v122 = vld [vmem:[#allocation5 + $0x74] sm:$0xf]
    %v123 = vld [vmem:[#allocation5 + $0x78] sm:$0xff]
    %v124 = vld [vmem:[#allocation5 + $0x80] sm:$0xf]
    %v125 = vld [vmem:[#allocation5 + $0x84] sm:$0xff]
    %v126 = vld [vmem:[#allocation5 + $0x8c] sm:$0xf]
    %v127 = vld [vmem:[#allocation5 + $0x90] sm:$0xff]
    %v128 = vld [vmem:[#allocation5 + $0x98] sm:$0xf]
    %v129 = vld [vmem:[#allocation5 + $0x9c] sm:$0xff]
    %v130 = vld [vmem:[#allocation5 + $0xa4] sm:$0xf]
    %v131 = vld [vmem:[#allocation5 + $0xa8] sm:$0xff]
    %v132 = vld [vmem:[#allocation5 + $0xb0] sm:$0xf]
    %v133 = vld [vmem:[#allocation5 + $0xb4] sm:$0xff]
    %v134 = vld [vmem:[#allocation5 + $0xbc] sm:$0xf]
    %v135 = vld [vmem:[#allocation5 + $0xc0] sm:$0xff]
    %v136 = vld [vmem:[#allocation5 + $0xc8] sm:$0xf]
    %v137 = vld [vmem:[#allocation5 + $0xcc] sm:$0xff]
    %v138 = vld [vmem:[#allocation5 + $0xd4] sm:$0xf]
    %v139 = vld [vmem:[#allocation5 + $0xd8] sm:$0xff]
    %v140 = vld [vmem:[#allocation5 + $0xe0] sm:$0xf]
    %v141 = vld [vmem:[#allocation5 + $0xe4] sm:$0xff]
    %v142 = vld [vmem:[#allocation5 + $0xec] sm:$0xf]
    %v143 = vld [vmem:[#allocation5 + $0xf0] sm:$0xff]
    %v144 = vld [vmem:[#allocation5 + $0xf8] sm:$0xf]
    %v145 = vld [vmem:[#allocation5 + $0xfc] sm:$0xff]
    %v146 = vld [vmem:[#allocation5 + $0x104] sm:$0xf]
    %v147 = vld [vmem:[#allocation5 + $0x108] sm:$0xff]
    %v148 = vld [vmem:[#allocation5 + $0x110] sm:$0xf]
    %v149 = vld [vmem:[#allocation5 + $0x114] sm:$0xff]
    %v150 = vld [vmem:[#allocation5 + $0x11c] sm:$0xf]
    %v151 = vld [vmem:[#allocation5 + $0x120] sm:$0xff]
    %v152 = vld [vmem:[#allocation5 + $0x128] sm:$0xf]
    %v153 = vld [vmem:[#allocation5 + $0x12c] sm:$0xff]
    %v154 = vld [vmem:[#allocation5 + $0x134] sm:$0xf]
    %v155 = vld [vmem:[#allocation5 + $0x138] sm:$0xff]
    %v156 = vld [vmem:[#allocation5 + $0x140] sm:$0xf]
    %v157 = vld [vmem:[#allocation5 + $0x144] sm:$0xff]
    %v158 = vld [vmem:[#allocation5 + $0x14c] sm:$0xf]
    %v159 = vld [vmem:[#allocation5 + $0x150] sm:$0xff]
    %v160 = vld [vmem:[#allocation5 + $0x158] sm:$0xf]
    %v161 = vld [vmem:[#allocation5 + $0x15c] sm:$0xff]
    %v162 = vld [vmem:[#allocation5 + $0x164] sm:$0xf]
    %v163 = vld [vmem:[#allocation5 + $0x168] sm:$0xff]
    %v164 = vld [vmem:[#allocation5 + $0x170] sm:$0xf]
    %v165 = vld [vmem:[#allocation5 + $0x174] sm:$0xff]
    %v166 = vld [vmem:[#allocation5 + $0x17c] sm:$0xf]
    %v167 = vld [vmem:[#allocation5 + $0x180] sm:$0xff]
    %v168 = vld [vmem:[#allocation5 + $0x188] sm:$0xf]
    %v169 = vld [vmem:[#allocation5 + $0x18c] sm:$0xff]
    %v170 = vld [vmem:[#allocation5 + $0x194] sm:$0xf]
    %v171 = vld [vmem:[#allocation5 + $0x198] sm:$0xff]
    %v172 = vld [vmem:[#allocation5 + $0x1a0] sm:$0xf]
    %v173 = vld [vmem:[#allocation5 + $0x1a4] sm:$0xff]
    %v174 = vld [vmem:[#allocation5 + $0x1ac] sm:$0xf]
    %v175 = vld [vmem:[#allocation5 + $0x1b0] sm:$0xff]
    %v176 = vld [vmem:[#allocation5 + $0x1b8] sm:$0xf]
    %v177 = vld [vmem:[#allocation5 + $0x1bc] sm:$0xff]
    %v178 = vld [vmem:[#allocation5 + $0x1c4] sm:$0xf]
    %v179 = vld [vmem:[#allocation5 + $0x1c8] sm:$0xff]
    %v180 = vld [vmem:[#allocation5 + $0x1d0] sm:$0xf]
    %v181 = vld [vmem:[#allocation5 + $0x1d4] sm:$0xff]
    %v182 = vld [vmem:[#allocation5 + $0x1dc] sm:$0xf]
    %v183 = vld [vmem:[#allocation5 + $0x1e0] sm:$0xff]
    %v184 = vld [vmem:[#allocation5 + $0x1e8] sm:$0xf]
    %v185 = vld [vmem:[#allocation5 + $0x1ec] sm:$0xff]
    %v186 = vld [vmem:[#allocation5 + $0x1f4] sm:$0xf]
    %v187 = vld [vmem:[#allocation5 + $0x1f8] sm:$0xff]
    %v188 = vld [vmem:[#allocation5 + $0x200] sm:$0xf]
    %v189 = vld [vmem:[#allocation5 + $0x204] sm:$0xff]
    %v190 = vld [vmem:[#allocation5 + $0x20c] sm:$0xf]
    %v191 = vld [vmem:[#allocation5 + $0x210] sm:$0xff]
    %v192 = vld [vmem:[#allocation5 + $0x218] sm:$0xf]
    %v193 = vld [vmem:[#allocation5 + $0x21c] sm:$0xff]
    %v194 = vld [vmem:[#allocation5 + $0x224] sm:$0xf]
    %v195 = vld [vmem:[#allocation5 + $0x228] sm:$0xff]
    %v196 = vld [vmem:[#allocation5 + $0x230] sm:$0xf]
    %v197 = vld [vmem:[#allocation5 + $0x234] sm:$0xff]
    %v198 = vld [vmem:[#allocation5 + $0x23c] sm:$0xf]
    %v199 = vld [vmem:[#allocation5 + $0x240] sm:$0xff]
    %v200 = vld [vmem:[#allocation5 + $0x248] sm:$0xf]
    %v201 = vld [vmem:[#allocation5 + $0x24c] sm:$0xff]
    %v202 = vld [vmem:[#allocation5 + $0x254] sm:$0xf]
    %v203 = vld [vmem:[#allocation5 + $0x258] sm:$0xff]
    %v204 = vld [vmem:[#allocation5 + $0x260] sm:$0xf]
    %v205 = vld [vmem:[#allocation5 + $0x264] sm:$0xff]
    %v206 = vld [vmem:[#allocation5 + $0x26c] sm:$0xf]
    %v207 = vld [vmem:[#allocation5 + $0x270] sm:$0xff]
    %v208 = vld [vmem:[#allocation5 + $0x278] sm:$0xf]
    %v209 = vld [vmem:[#allocation5 + $0x27c] sm:$0xff]
    %v210 = vld [vmem:[#allocation5 + $0x284] sm:$0xf]
    %v211 = vld [vmem:[#allocation5 + $0x288] sm:$0xff]
    %v212 = vld [vmem:[#allocation5 + $0x290] sm:$0xf]
    %v213 = vld [vmem:[#allocation5 + $0x294] sm:$0xff]
    %v214 = vld [vmem:[#allocation5 + $0x29c] sm:$0xf]
    %v215 = vld [vmem:[#allocation5 + $0x2a0] sm:$0xff]
    %v216 = vld [vmem:[#allocation5 + $0x2a8] sm:$0xf]
    %v217 = vld [vmem:[#allocation5 + $0x2ac] sm:$0xff]
    %v218 = vld [vmem:[#allocation5 + $0x2b4] sm:$0xf]
    %v219 = vld [vmem:[#allocation5 + $0x2b8] sm:$0xff]
    %v220 = vld [vmem:[#allocation5 + $0x2c0] sm:$0xf]
    %v221 = vld [vmem:[#allocation5 + $0x2c4] sm:$0xff]
    %v222 = vld [vmem:[#allocation5 + $0x2cc] sm:$0xf]
    %v223 = vld [vmem:[#allocation5 + $0x2d0] sm:$0xff]
    %v224 = vld [vmem:[#allocation5 + $0x2d8] sm:$0xf]
    %v225 = vld [vmem:[#allocation5 + $0x2dc] sm:$0xff]
    %v226 = vld [vmem:[#allocation5 + $0x2e4] sm:$0xf]
    %v227 = vld [vmem:[#allocation5 + $0x2e8] sm:$0xff]
    %v228 = vld [vmem:[#allocation5 + $0x2f0] sm:$0xf]
    %v229 = vld [vmem:[#allocation5 + $0x2f4] sm:$0xff]
    %v230 = vld [vmem:[#allocation5 + $0x2fc] sm:$0xf]
    %v231 = vld [vmem:[#allocation7] sm:$0x7]
    %v233 = vperm.slane %v231, 0
    %v234 = vperm.slane %v231, 1
    %v235 = vperm.slane %v231, 2
    %v241 = vunpack.c.l.b16 %v101
    %v242 = vunpack.c.h.b16 %v101
    %v243 = vunpack.c.l.b16 %v102
    %v244 = vunpack.c.h.b16 %v102
    %v245 = vpack.c.b16 %v241, %v241
    %v246 = vpack.c.b16 %v242, %v242
    %v247 = vpack.c.b16 %v243, %v243
    %v248 = vpack.c.b16 %v244, %v244
    %v381 = vunpack.c.l.b16 %v103
    %v382 = vunpack.c.h.b16 %v103
    %v383 = vunpack.c.l.b16 %v104
    %v384 = vunpack.c.l.b16 %v105
    %v385 = vunpack.c.h.b16 %v105
    %v386 = vunpack.c.l.b16 %v106
    %v387 = vunpack.c.l.b16 %v107
    %v388 = vunpack.c.h.b16 %v107
    %v389 = vunpack.c.l.b16 %v108
    %v390 = vunpack.c.l.b16 %v109
    %v391 = vunpack.c.h.b16 %v109
    %v392 = vunpack.c.l.b16 %v110
    %v393 = vunpack.c.l.b16 %v111
    %v394 = vunpack.c.h.b16 %v111
    %v395 = vunpack.c.l.b16 %v112
    %v396 = vunpack.c.l.b16 %v113
    %v397 = vunpack.c.h.b16 %v113
    %v398 = vunpack.c.l.b16 %v114
    %v399 = vunpack.c.l.b16 %v115
    %v400 = vunpack.c.h.b16 %v115
    %v401 = vunpack.c.l.b16 %v116
    %v402 = vunpack.c.l.b16 %v117
    %v403 = vunpack.c.h.b16 %v117
    %v404 = vunpack.c.l.b16 %v118
    %v405 = vunpack.c.l.b16 %v119
    %v406 = vunpack.c.h.b16 %v119
    %v407 = vunpack.c.l.b16 %v120
    %v408 = vunpack.c.l.b16 %v121
    %v409 = vunpack.c.h.b16 %v121
    %v410 = vunpack.c.l.b16 %v122
    %v411 = vunpack.c.l.b16 %v123
    %v412 = vunpack.c.h.b16 %v123
    %v413 = vunpack.c.l.b16 %v124
    %v414 = vunpack.c.l.b16 %v125
    %v415 = vunpack.c.h.b16 %v125
    %v416 = vunpack.c.l.b16 %v126
    %v417 = vunpack.c.l.b16 %v127
    %v418 = vunpack.c.h.b16 %v127
    %v419 = vunpack.c.l.b16 %v128
    %v420 = vunpack.c.l.b16 %v129
    %v421 = vunpack.c.h.b16 %v129
    %v422 = vunpack.c.l.b16 %v130
    %v423 = vunpack.c.l.b16 %v131
    %v424 = vunpack.c.h.b16 %v131
    %v425 = vunpack.c.l.b16 %v132
    %v426 = vunpack.c.l.b16 %v133
    %v427 = vunpack.c.h.b16 %v133
    %v428 = vunpack.c.l.b16 %v134
    %v429 = vunpack.c.l.b16 %v135
    %v430 = vunpack.c.h.b16 %v135
    %v431 = vunpack.c.l.b16 %v136
    %v432 = vunpack.c.l.b16 %v137
    %v433 = vunpack.c.h.b16 %v137
    %v434 = vunpack.c.l.b16 %v138
    %v435 = vunpack.c.l.b16 %v139
    %v436 = vunpack.c.h.b16 %v139
    %v437 = vunpack.c.l.b16 %v140
    %v438 = vunpack.c.l.b16 %v141
    %v439 = vunpack.c.h.b16 %v141
    %v440 = vunpack.c.l.b16 %v142
    %v441 = vunpack.c.l.b16 %v143
    %v442 = vunpack.c.h.b16 %v143
    %v443 = vunpack.c.l.b16 %v144
    %v444 = vunpack.c.l.b16 %v145
    %v445 = vunpack.c.h.b16 %v145
    %v446 = vunpack.c.l.b16 %v146
    %v447 = vunpack.c.l.b16 %v147
    %v448 = vunpack.c.h.b16 %v147
    %v449 = vunpack.c.l.b16 %v148
    %v450 = vunpack.c.l.b16 %v149
    %v451 = vunpack.c.h.b16 %v149
    %v452 = vunpack.c.l.b16 %v150
    %v453 = vunpack.c.l.b16 %v151
    %v454 = vunpack.c.h.b16 %v151
    %v455 = vunpack.c.l.b16 %v152
    %v456 = vunpack.c.l.b16 %v153
    %v457 = vunpack.c.h.b16 %v153
    %v458 = vunpack.c.l.b16 %v154
    %v459 = vunpack.c.l.b16 %v155
    %v460 = vunpack.c.h.b16 %v155
    %v461 = vunpack.c.l.b16 %v156
    %v462 = vunpack.c.l.b16 %v157
    %v463 = vunpack.c.h.b16 %v157
    %v464 = vunpack.c.l.b16 %v158
    %v465 = vunpack.c.l.b16 %v159
    %v466 = vunpack.c.h.b16 %v159
    %v467 = vunpack.c.l.b16 %v160
    %v468 = vunpack.c.l.b16 %v161
    %v469 = vunpack.c.h.b16 %v161
    %v470 = vunpack.c.l.b16 %v162
    %v471 = vunpack.c.l.b16 %v163
    %v472 = vunpack.c.h.b16 %v163
    %v473 = vunpack.c.l.b16 %v164
    %v474 = vunpack.c.l.b16 %v165
    %v475 = vunpack.c.h.b16 %v165
    %v476 = vunpack.c.l.b16 %v166
    %v477 = vunpack.c.l.b16 %v167
    %v478 = vunpack.c.h.b16 %v167
    %v479 = vunpack.c.l.b16 %v168
    %v480 = vunpack.c.l.b16 %v169
    %v481 = vunpack.c.h.b16 %v169
    %v482 = vunpack.c.l.b16 %v170
    %v483 = vunpack.c.l.b16 %v171
    %v484 = vunpack.c.h.b16 %v171
    %v485 = vunpack.c.l.b16 %v172
    %v486 = vunpack.c.l.b16 %v173
    %v487 = vunpack.c.h.b16 %v173
    %v488 = vunpack.c.l.b16 %v174
    %v489 = vunpack.c.l.b16 %v175
    %v490 = vunpack.c.h.b16 %v175
    %v491 = vunpack.c.l.b16 %v176
    %v492 = vunpack.c.l.b16 %v177
    %v493 = vunpack.c.h.b16 %v177
    %v494 = vunpack.c.l.b16 %v178
    %v495 = vunpack.c.l.b16 %v179
    %v496 = vunpack.c.h.b16 %v179
    %v497 = vunpack.c.l.b16 %v180
    %v498 = vunpack.c.l.b16 %v181
    %v499 = vunpack.c.h.b16 %v181
    %v500 = vunpack.c.l.b16 %v182
    %v501 = vunpack.c.l.b16 %v183
    %v502 = vunpack.c.h.b16 %v183
    %v503 = vunpack.c.l.b16 %v184
    %v504 = vunpack.c.l.b16 %v185
    %v505 = vunpack.c.h.b16 %v185
    %v506 = vunpack.c.l.b16 %v186
    %v507 = vunpack.c.l.b16 %v187
    %v508 = vunpack.c.h.b16 %v187
    %v509 = vunpack.c.l.b16 %v188
    %v510 = vunpack.c.l.b16 %v189
    %v511 = vunpack.c.h.b16 %v189
    %v512 = vunpack.c.l.b16 %v190
    %v513 = vunpack.c.l.b16 %v191
    %v514 = vunpack.c.h.b16 %v191
    %v515 = vunpack.c.l.b16 %v192
    %v516 = vunpack.c.l.b16 %v193
    %v517 = vunpack.c.h.b16 %v193
    %v518 = vunpack.c.l.b16 %v194
    %v519 = vunpack.c.l.b16 %v195
    %v520 = vunpack.c.h.b16 %v195
    %v521 = vunpack.c.l.b16 %v196
    %v522 = vunpack.c.l.b16 %v197
    %v523 = vunpack.c.h.b16 %v197
    %v524 = vunpack.c.l.b16 %v198
    %v525 = vunpack.c.l.b16 %v199
    %v526 = vunpack.c.h.b16 %v199
    %v527 = vunpack.c.l.b16 %v200
    %v528 = vunpack.c.l.b16 %v201
    %v529 = vunpack.c.h.b16 %v201
    %v530 = vunpack.c.l.b16 %v202
    %v531 = vunpack.c.l.b16 %v203
    %v532 = vunpack.c.h.b16 %v203
    %v533 = vunpack.c.l.b16 %v204
    %v534 = vunpack.c.l.b16 %v205
    %v535 = vunpack.c.h.b16 %v205
    %v536 = vunpack.c.l.b16 %v206
    %v537 = vunpack.c.l.b16 %v207
    %v538 = vunpack.c.h.b16 %v207
    %v539 = vunpack.c.l.b16 %v208
    %v540 = vunpack.c.l.b16 %v209
    %v541 = vunpack.c.h.b16 %v209
    %v542 = vunpack.c.l.b16 %v210
    %v543 = vunpack.c.l.b16 %v211
    %v544 = vunpack.c.h.b16 %v211
    %v545 = vunpack.c.l.b16 %v212
    %v546 = vunpack.c.l.b16 %v213
    %v547 = vunpack.c.h.b16 %v213
    %v548 = vunpack.c.l.b16 %v214
    %v549 = vunpack.c.l.b16 %v215
    %v550 = vunpack.c.h.b16 %v215
    %v551 = vunpack.c.l.b16 %v216
    %v552 = vunpack.c.l.b16 %v217
    %v553 = vunpack.c.h.b16 %v217
    %v554 = vunpack.c.l.b16 %v218
    %v555 = vunpack.c.l.b16 %v219
    %v556 = vunpack.c.h.b16 %v219
    %v557 = vunpack.c.l.b16 %v220
    %v558 = vunpack.c.l.b16 %v221
    %v559 = vunpack.c.h.b16 %v221
    %v560 = vunpack.c.l.b16 %v222
    %v561 = vunpack.c.l.b16 %v223
    %v562 = vunpack.c.h.b16 %v223
    %v563 = vunpack.c.l.b16 %v224
    %v564 = vunpack.c.l.b16 %v225
    %v565 = vunpack.c.h.b16 %v225
    %v566 = vunpack.c.l.b16 %v226
    %v567 = vunpack.c.l.b16 %v227
    %v568 = vunpack.c.h.b16 %v227
    %v569 = vunpack.c.l.b16 %v228
    %v570 = vunpack.c.l.b16 %v229
    %v571 = vunpack.c.h.b16 %v229
    %v572 = vunpack.c.l.b16 %v230
    %v573 = vpack.c.b16 %v384, %v381
    %v574 = vpack.c.b16 %v385, %v382
    %v575 = vpack.c.b16 %v386, %v383
    %v576 = vpack.c.b16 %v390, %v387
    %v577 = vpack.c.b16 %v391, %v388
    %v578 = vpack.c.b16 %v392, %v389
    %v579 = vpack.c.b16 %v396, %v393
    %v580 = vpack.c.b16 %v397, %v394
    %v581 = vpack.c.b16 %v398, %v395
    %v582 = vpack.c.b16 %v402, %v399
    %v583 = vpack.c.b16 %v403, %v400
    %v584 = vpack.c.b16 %v404, %v401
    %v585 = vpack.c.b16 %v408, %v405
    %v586 = vpack.c.b16 %v409, %v406
    %v587 = vpack.c.b16 %v410, %v407
    %v588 = vpack.c.b16 %v414, %v411
    %v589 = vpack.c.b16 %v415, %v412
    %v590 = vpack.c.b16 %v416, %v413
    %v591 = vpack.c.b16 %v420, %v417
    %v592 = vpack.c.b16 %v421, %v418
    %v593 = vpack.c.b16 %v422, %v419
    %v594 = vpack.c.b16 %v426, %v423
    %v595 = vpack.c.b16 %v427, %v424
    %v596 = vpack.c.b16 %v428, %v425
    %v597 = vpack.c.b16 %v432, %v429
    %v598 = vpack.c.b16 %v433, %v430
    %v599 = vpack.c.b16 %v434, %v431
    %v600 = vpack.c.b16 %v438, %v435
    %v601 = vpack.c.b16 %v439, %v436
    %v602 = vpack.c.b16 %v440, %v437
    %v603 = vpack.c.b16 %v444, %v441
    %v604 = vpack.c.b16 %v445, %v442
    %v605 = vpack.c.b16 %v446, %v443
    %v606 = vpack.c.b16 %v450, %v447
    %v607 = vpack.c.b16 %v451, %v448
    %v608 = vpack.c.b16 %v452, %v449
    %v609 = vpack.c.b16 %v456, %v453
    %v610 = vpack.c.b16 %v457, %v454
    %v611 = vpack.c.b16 %v458, %v455
    %v612 = vpack.c.b16 %v462, %v459
    %v613 = vpack.c.b16 %v463, %v460
    %v614 = vpack.c.b16 %v464, %v461
    %v615 = vpack.c.b16 %v468, %v465
    %v616 = vpack.c.b16 %v469, %v466
    %v617 = vpack.c.b16 %v470, %v467
    %v618 = vpack.c.b16 %v474, %v471
    %v619 = vpack.c.b16 %v475, %v472
    %v620 = vpack.c.b16 %v476, %v473
    %v621 = vpack.c.b16 %v480, %v477
    %v622 = vpack.c.b16 %v481, %v478
    %v623 = vpack.c.b16 %v482, %v479
    %v624 = vpack.c.b16 %v486, %v483
    %v625 = vpack.c.b16 %v487, %v484
    %v626 = vpack.c.b16 %v488, %v485
    %v627 = vpack.c.b16 %v492, %v489
    %v628 = vpack.c.b16 %v493, %v490
    %v629 = vpack.c.b16 %v494, %v491
    %v630 = vpack.c.b16 %v498, %v495
    %v631 = vpack.c.b16 %v499, %v496
    %v632 = vpack.c.b16 %v500, %v497
    %v633 = vpack.c.b16 %v504, %v501
    %v634 = vpack.c.b16 %v505, %v502
    %v635 = vpack.c.b16 %v506, %v503
    %v636 = vpack.c.b16 %v510, %v507
    %v637 = vpack.c.b16 %v511, %v508
    %v638 = vpack.c.b16 %v512, %v509
    %v639 = vpack.c.b16 %v516, %v513
    %v640 = vpack.c.b16 %v517, %v514
    %v641 = vpack.c.b16 %v518, %v515
    %v642 = vpack.c.b16 %v522, %v519
    %v643 = vpack.c.b16 %v523, %v520
    %v644 = vpack.c.b16 %v524, %v521
    %v645 = vpack.c.b16 %v528, %v525
    %v646 = vpack.c.b16 %v529, %v526
    %v647 = vpack.c.b16 %v530, %v527
    %v648 = vpack.c.b16 %v534, %v531
    %v649 = vpack.c.b16 %v535, %v532
    %v650 = vpack.c.b16 %v536, %v533
    %v651 = vpack.c.b16 %v540, %v537
    %v652 = vpack.c.b16 %v541, %v538
    %v653 = vpack.c.b16 %v542, %v539
    %v654 = vpack.c.b16 %v546, %v543
    %v655 = vpack.c.b16 %v547, %v544
    %v656 = vpack.c.b16 %v548, %v545
    %v657 = vpack.c.b16 %v552, %v549
    %v658 = vpack.c.b16 %v553, %v550
    %v659 = vpack.c.b16 %v554, %v551
    %v660 = vpack.c.b16 %v558, %v555
    %v661 = vpack.c.b16 %v559, %v556
    %v662 = vpack.c.b16 %v560, %v557
    %v663 = vpack.c.b16 %v564, %v561
    %v664 = vpack.c.b16 %v565, %v562
    %v665 = vpack.c.b16 %v566, %v563
    %v666 = vpack.c.b16 %v570, %v567
    %v667 = vpack.c.b16 %v571, %v568
    %v668 = vpack.c.b16 %v572, %v569
    %765 = vmatpush.bf16.msra.mxu0 %v594
    %766 = vmatpush.bf16.msra.mxu0 %v591
    %767 = vmatpush.bf16.msra.mxu0 %v588
    %768 = vmatpush.bf16.msra.mxu0 %v585
    %769 = vmatpush.bf16.msra.mxu0 %v582
    %770 = vmatpush.bf16.msra.mxu0 %v579
    %771 = vmatpush.bf16.msra.mxu0 %v576
    %772 = vmatpush.bf16.msra.mxu0 %v573
    %773 = vmatmul.bf16.gmra.mxu0 %v245
    %v774 = vpop.f32.mrf.mxu0
    %v775 = vadd.f32 %v233, %v774
    %v776 = vpop.f32.mrf.mxu0
    %777 = vdwg.mxu0
    %778 = vmatpush.bf16.msra.mxu0 %v618
    %779 = vmatpush.bf16.msra.mxu0 %v615
    %780 = vmatpush.bf16.msra.mxu0 %v612
    %781 = vmatpush.bf16.msra.mxu0 %v609
    %782 = vmatpush.bf16.msra.mxu0 %v606
    %783 = vmatpush.bf16.msra.mxu0 %v603
    %784 = vmatpush.bf16.msra.mxu0 %v600
    %785 = vmatpush.bf16.msra.mxu0 %v597
    %786 = vmatmul.bf16.gmra.mxu0 %v246
    %v787 = vpop.f32.mrf.mxu0
    %v788 = vadd.f32 %v775, %v787
    %v789 = vpop.f32.mrf.mxu0
    %790 = vdwg.mxu0
    %791 = vmatpush.bf16.msra.mxu0 %v642
    %792 = vmatpush.bf16.msra.mxu0 %v639
    %793 = vmatpush.bf16.msra.mxu0 %v636
    %794 = vmatpush.bf16.msra.mxu0 %v633
    %795 = vmatpush.bf16.msra.mxu0 %v630
    %796 = vmatpush.bf16.msra.mxu0 %v627
    %797 = vmatpush.bf16.msra.mxu0 %v624
    %798 = vmatpush.bf16.msra.mxu0 %v621
    %799 = vmatmul.bf16.gmra.mxu0 %v247
    %v800 = vpop.f32.mrf.mxu0
    %v801 = vadd.f32 %v788, %v800
    %v802 = vpop.f32.mrf.mxu0
    %803 = vdwg.mxu0
    %804 = vmatpush.bf16.msra.mxu0 %v666
    %805 = vmatpush.bf16.msra.mxu0 %v663
    %806 = vmatpush.bf16.msra.mxu0 %v660
    %807 = vmatpush.bf16.msra.mxu0 %v657
    %808 = vmatpush.bf16.msra.mxu0 %v654
    %809 = vmatpush.bf16.msra.mxu0 %v651
    %810 = vmatpush.bf16.msra.mxu0 %v648
    %811 = vmatpush.bf16.msra.mxu0 %v645
    %812 = vmatmul.bf16.gmra.mxu0 %v248
    %v813 = vpop.f32.mrf.mxu0
    %v814 = vadd.f32 %v801, %v813
    %v815 = vpop.f32.mrf.mxu0
    %816 = vdwg.mxu0
    %817 = vmatpush.bf16.msra.mxu0 %v595
    %818 = vmatpush.bf16.msra.mxu0 %v592
    %819 = vmatpush.bf16.msra.mxu0 %v589
    %820 = vmatpush.bf16.msra.mxu0 %v586
    %821 = vmatpush.bf16.msra.mxu0 %v583
    %822 = vmatpush.bf16.msra.mxu0 %v580
    %823 = vmatpush.bf16.msra.mxu0 %v577
    %824 = vmatpush.bf16.msra.mxu0 %v574
    %825 = vmatmul.bf16.gmra.mxu0 %v245
    %v826 = vpop.f32.mrf.mxu0
    %v827 = vadd.f32 %v234, %v826
    %v828 = vpop.f32.mrf.mxu0
    %829 = vdwg.mxu0
    %830 = vmatpush.bf16.msra.mxu0 %v619
    %831 = vmatpush.bf16.msra.mxu0 %v616
    %832 = vmatpush.bf16.msra.mxu0 %v613
    %833 = vmatpush.bf16.msra.mxu0 %v610
    %834 = vmatpush.bf16.msra.mxu0 %v607
    %835 = vmatpush.bf16.msra.mxu0 %v604
    %836 = vmatpush.bf16.msra.mxu0 %v601
    %837 = vmatpush.bf16.msra.mxu0 %v598
    %838 = vmatmul.bf16.gmra.mxu0 %v246
    %v839 = vpop.f32.mrf.mxu0
    %v840 = vadd.f32 %v827, %v839
    %v841 = vpop.f32.mrf.mxu0
    %842 = vdwg.mxu0
    %843 = vmatpush.bf16.msra.mxu0 %v643
    %844 = vmatpush.bf16.msra.mxu0 %v640
    %845 = vmatpush.bf16.msra.mxu0 %v637
    %846 = vmatpush.bf16.msra.mxu0 %v634
    %847 = vmatpush.bf16.msra.mxu0 %v631
    %848 = vmatpush.bf16.msra.mxu0 %v628
    %849 = vmatpush.bf16.msra.mxu0 %v625
    %850 = vmatpush.bf16.msra.mxu0 %v622
    %851 = vmatmul.bf16.gmra.mxu0 %v247
    %v852 = vpop.f32.mrf.mxu0
    %v853 = vadd.f32 %v840, %v852
    %v854 = vpop.f32.mrf.mxu0
    %855 = vdwg.mxu0
    %856 = vmatpush.bf16.msra.mxu0 %v667
    %857 = vmatpush.bf16.msra.mxu0 %v664
    %858 = vmatpush.bf16.msra.mxu0 %v661
    %859 = vmatpush.bf16.msra.mxu0 %v658
    %860 = vmatpush.bf16.msra.mxu0 %v655
    %861 = vmatpush.bf16.msra.mxu0 %v652
    %862 = vmatpush.bf16.msra.mxu0 %v649
    %863 = vmatpush.bf16.msra.mxu0 %v646
    %864 = vmatmul.bf16.gmra.mxu0 %v248
    %v865 = vpop.f32.mrf.mxu0
    %v866 = vadd.f32 %v853, %v865
    %v867 = vpop.f32.mrf.mxu0
    %868 = vdwg.mxu0
    %869 = vmatpush.bf16.msra.mxu0 %v596
    %870 = vmatpush.bf16.msra.mxu0 %v593
    %871 = vmatpush.bf16.msra.mxu0 %v590
    %872 = vmatpush.bf16.msra.mxu0 %v587
    %873 = vmatpush.bf16.msra.mxu0 %v584
    %874 = vmatpush.bf16.msra.mxu0 %v581
    %875 = vmatpush.bf16.msra.mxu0 %v578
    %876 = vmatpush.bf16.msra.mxu0 %v575
    %877 = vmatmul.bf16.gmra.mxu0 %v245
    %v878 = vpop.f32.mrf.mxu0
    %v879 = vadd.f32 %v235, %v878
    %v880 = vpop.f32.mrf.mxu0
    %881 = vdwg.mxu0
    %882 = vmatpush.bf16.msra.mxu0 %v620
    %883 = vmatpush.bf16.msra.mxu0 %v617
    %884 = vmatpush.bf16.msra.mxu0 %v614
    %885 = vmatpush.bf16.msra.mxu0 %v611
    %886 = vmatpush.bf16.msra.mxu0 %v608
    %887 = vmatpush.bf16.msra.mxu0 %v605
    %888 = vmatpush.bf16.msra.mxu0 %v602
    %889 = vmatpush.bf16.msra.mxu0 %v599
    %890 = vmatmul.bf16.gmra.mxu0 %v246
    %v891 = vpop.f32.mrf.mxu0
    %v892 = vadd.f32 %v879, %v891
    %v893 = vpop.f32.mrf.mxu0
    %894 = vdwg.mxu0
    %895 = vmatpush.bf16.msra.mxu0 %v644
    %896 = vmatpush.bf16.msra.mxu0 %v641
    %897 = vmatpush.bf16.msra.mxu0 %v638
    %898 = vmatpush.bf16.msra.mxu0 %v635
    %899 = vmatpush.bf16.msra.mxu0 %v632
    %900 = vmatpush.bf16.msra.mxu0 %v629
    %901 = vmatpush.bf16.msra.mxu0 %v626
    %902 = vmatpush.bf16.msra.mxu0 %v623
    %903 = vmatmul.bf16.gmra.mxu0 %v247
    %v904 = vpop.f32.mrf.mxu0
    %v905 = vadd.f32 %v892, %v904
    %v906 = vpop.f32.mrf.mxu0
    %907 = vdwg.mxu0
    %908 = vmatpush.bf16.msra.mxu0 %v668
    %909 = vmatpush.bf16.msra.mxu0 %v665
    %910 = vmatpush.bf16.msra.mxu0 %v662
    %911 = vmatpush.bf16.msra.mxu0 %v659
    %912 = vmatpush.bf16.msra.mxu0 %v656
    %913 = vmatpush.bf16.msra.mxu0 %v653
    %914 = vmatpush.bf16.msra.mxu0 %v650
    %915 = vmatpush.bf16.msra.mxu0 %v647
    %916 = vmatmul.bf16.gmra.mxu0 %v248
    %v917 = vpop.f32.mrf.mxu0
    %v918 = vadd.f32 %v905, %v917
    %v919 = vpop.f32.mrf.mxu0
    %920 = vdwg.mxu0
    %v921 = vmax.f32 %v814, 0.0
    %v922 = vmax.f32 %v866, 0.0
    %v923 = vmax.f32 %v918, 0.0
    %v924 = vpack.c.bf16 %v921, %v921
    %v925 = vpack.c.bf16 %v922, %v922
    %v926 = vpack.c.bf16 %v923, %v923
    %v927 = vld [vmem:[#allocation8] sm:$0xff]
    %v928 = vld [vmem:[#allocation8 + $0x8] sm:$0xf]
    %v929 = vld [vmem:[#allocation8 + $0xc] sm:$0xff]
    %v930 = vld [vmem:[#allocation8 + $0x14] sm:$0xf]
    %v931 = vld [vmem:[#allocation8 + $0x18] sm:$0xff]
    %v932 = vld [vmem:[#allocation8 + $0x20] sm:$0xf]
    %v933 = vld [vmem:[#allocation8 + $0x24] sm:$0xff]
    %v934 = vld [vmem:[#allocation8 + $0x2c] sm:$0xf]
    %v935 = vld [vmem:[#allocation8 + $0x30] sm:$0xff]
    %v936 = vld [vmem:[#allocation8 + $0x38] sm:$0xf]
    %v937 = vld [vmem:[#allocation8 + $0x3c] sm:$0xff]
    %v938 = vld [vmem:[#allocation8 + $0x44] sm:$0xf]
    %v939 = vld [vmem:[#allocation8 + $0x48] sm:$0xff]
    %v940 = vld [vmem:[#allocation8 + $0x50] sm:$0xf]
    %v941 = vld [vmem:[#allocation8 + $0x54] sm:$0xff]
    %v942 = vld [vmem:[#allocation8 + $0x5c] sm:$0xf]
    %v943 = vld [vmem:[#allocation8 + $0x60] sm:$0xff]
    %v944 = vld [vmem:[#allocation8 + $0x68] sm:$0xf]
    %v945 = vld [vmem:[#allocation8 + $0x6c] sm:$0xff]
    %v946 = vld [vmem:[#allocation8 + $0x74] sm:$0xf]
    %v947 = vld [vmem:[#allocation8 + $0x78] sm:$0xff]
    %v948 = vld [vmem:[#allocation8 + $0x80] sm:$0xf]
    %v949 = vld [vmem:[#allocation8 + $0x84] sm:$0xff]
    %v950 = vld [vmem:[#allocation8 + $0x8c] sm:$0xf]
    %v951 = vld [vmem:[#allocation8 + $0x90] sm:$0xff]
    %v952 = vld [vmem:[#allocation8 + $0x98] sm:$0xf]
    %v953 = vld [vmem:[#allocation8 + $0x9c] sm:$0xff]
    %v954 = vld [vmem:[#allocation8 + $0xa4] sm:$0xf]
    %v955 = vld [vmem:[#allocation8 + $0xa8] sm:$0xff]
    %v956 = vld [vmem:[#allocation8 + $0xb0] sm:$0xf]
    %v957 = vld [vmem:[#allocation8 + $0xb4] sm:$0xff]
    %v958 = vld [vmem:[#allocation8 + $0xbc] sm:$0xf]
    %v959 = vld [vmem:[#allocation8 + $0xc0] sm:$0xff]
    %v960 = vld [vmem:[#allocation8 + $0xc8] sm:$0xf]
    %v961 = vld [vmem:[#allocation8 + $0xcc] sm:$0xff]
    %v962 = vld [vmem:[#allocation8 + $0xd4] sm:$0xf]
    %v963 = vld [vmem:[#allocation8 + $0xd8] sm:$0xff]
    %v964 = vld [vmem:[#allocation8 + $0xe0] sm:$0xf]
    %v965 = vld [vmem:[#allocation8 + $0xe4] sm:$0xff]
    %v966 = vld [vmem:[#allocation8 + $0xec] sm:$0xf]
    %v967 = vld [vmem:[#allocation8 + $0xf0] sm:$0xff]
    %v968 = vld [vmem:[#allocation8 + $0xf8] sm:$0xf]
    %v969 = vld [vmem:[#allocation8 + $0xfc] sm:$0xff]
    %v970 = vld [vmem:[#allocation8 + $0x104] sm:$0xf]
    %v971 = vld [vmem:[#allocation8 + $0x108] sm:$0xff]
    %v972 = vld [vmem:[#allocation8 + $0x110] sm:$0xf]
    %v973 = vld [vmem:[#allocation8 + $0x114] sm:$0xff]
    %v974 = vld [vmem:[#allocation8 + $0x11c] sm:$0xf]
    %v975 = vld [vmem:[#allocation8 + $0x120] sm:$0xff]
    %v976 = vld [vmem:[#allocation8 + $0x128] sm:$0xf]
    %v977 = vld [vmem:[#allocation8 + $0x12c] sm:$0xff]
    %v978 = vld [vmem:[#allocation8 + $0x134] sm:$0xf]
    %v979 = vld [vmem:[#allocation8 + $0x138] sm:$0xff]
    %v980 = vld [vmem:[#allocation8 + $0x140] sm:$0xf]
    %v981 = vld [vmem:[#allocation8 + $0x144] sm:$0xff]
    %v982 = vld [vmem:[#allocation8 + $0x14c] sm:$0xf]
    %v983 = vld [vmem:[#allocation8 + $0x150] sm:$0xff]
    %v984 = vld [vmem:[#allocation8 + $0x158] sm:$0xf]
    %v985 = vld [vmem:[#allocation8 + $0x15c] sm:$0xff]
    %v986 = vld [vmem:[#allocation8 + $0x164] sm:$0xf]
    %v987 = vld [vmem:[#allocation8 + $0x168] sm:$0xff]
    %v988 = vld [vmem:[#allocation8 + $0x170] sm:$0xf]
    %v989 = vld [vmem:[#allocation8 + $0x174] sm:$0xff]
    %v990 = vld [vmem:[#allocation8 + $0x17c] sm:$0xf]
    %v991 = vld [vmem:[#allocation8 + $0x180] sm:$0xff]
    %v992 = vld [vmem:[#allocation8 + $0x188] sm:$0xf]
    %v993 = vld [vmem:[#allocation8 + $0x18c] sm:$0xff]
    %v994 = vld [vmem:[#allocation8 + $0x194] sm:$0xf]
    %v995 = vld [vmem:[#allocation8 + $0x198] sm:$0xff]
    %v996 = vld [vmem:[#allocation8 + $0x1a0] sm:$0xf]
    %v997 = vld [vmem:[#allocation8 + $0x1a4] sm:$0xff]
    %v998 = vld [vmem:[#allocation8 + $0x1ac] sm:$0xf]
    %v999 = vld [vmem:[#allocation8 + $0x1b0] sm:$0xff]
    %v1000 = vld [vmem:[#allocation8 + $0x1b8] sm:$0xf]
    %v1001 = vld [vmem:[#allocation8 + $0x1bc] sm:$0xff]
    %v1002 = vld [vmem:[#allocation8 + $0x1c4] sm:$0xf]
    %v1003 = vld [vmem:[#allocation8 + $0x1c8] sm:$0xff]
    %v1004 = vld [vmem:[#allocation8 + $0x1d0] sm:$0xf]
    %v1005 = vld [vmem:[#allocation8 + $0x1d4] sm:$0xff]
    %v1006 = vld [vmem:[#allocation8 + $0x1dc] sm:$0xf]
    %v1007 = vld [vmem:[#allocation8 + $0x1e0] sm:$0xff]
    %v1008 = vld [vmem:[#allocation8 + $0x1e8] sm:$0xf]
    %v1009 = vld [vmem:[#allocation8 + $0x1ec] sm:$0xff]
    %v1010 = vld [vmem:[#allocation8 + $0x1f4] sm:$0xf]
    %v1011 = vld [vmem:[#allocation8 + $0x1f8] sm:$0xff]
    %v1012 = vld [vmem:[#allocation8 + $0x200] sm:$0xf]
    %v1013 = vld [vmem:[#allocation8 + $0x204] sm:$0xff]
    %v1014 = vld [vmem:[#allocation8 + $0x20c] sm:$0xf]
    %v1015 = vld [vmem:[#allocation8 + $0x210] sm:$0xff]
    %v1016 = vld [vmem:[#allocation8 + $0x218] sm:$0xf]
    %v1017 = vld [vmem:[#allocation8 + $0x21c] sm:$0xff]
    %v1018 = vld [vmem:[#allocation8 + $0x224] sm:$0xf]
    %v1019 = vld [vmem:[#allocation8 + $0x228] sm:$0xff]
    %v1020 = vld [vmem:[#allocation8 + $0x230] sm:$0xf]
    %v1021 = vld [vmem:[#allocation8 + $0x234] sm:$0xff]
    %v1022 = vld [vmem:[#allocation8 + $0x23c] sm:$0xf]
    %v1023 = vld [vmem:[%s4] sm:$0x7]
    %v1025 = vperm.slane %v1023, 0
    %v1026 = vperm.slane %v1023, 1
    %v1027 = vperm.slane %v1023, 2
    %v1127 = vunpack.c.l.b16 %v927
    %v1128 = vunpack.c.h.b16 %v927
    %v1129 = vunpack.c.l.b16 %v928
    %v1130 = vunpack.c.l.b16 %v929
    %v1131 = vunpack.c.h.b16 %v929
    %v1132 = vunpack.c.l.b16 %v930
    %v1133 = vunpack.c.l.b16 %v931
    %v1134 = vunpack.c.h.b16 %v931
    %v1135 = vunpack.c.l.b16 %v932
    %v1136 = vunpack.c.l.b16 %v933
    %v1137 = vunpack.c.h.b16 %v933
    %v1138 = vunpack.c.l.b16 %v934
    %v1139 = vunpack.c.l.b16 %v935
    %v1140 = vunpack.c.h.b16 %v935
    %v1141 = vunpack.c.l.b16 %v936
    %v1142 = vunpack.c.l.b16 %v937
    %v1143 = vunpack.c.h.b16 %v937
    %v1144 = vunpack.c.l.b16 %v938
    %v1145 = vunpack.c.l.b16 %v939
    %v1146 = vunpack.c.h.b16 %v939
    %v1147 = vunpack.c.l.b16 %v940
    %v1148 = vunpack.c.l.b16 %v941
    %v1149 = vunpack.c.h.b16 %v941
    %v1150 = vunpack.c.l.b16 %v942
    %v1151 = vunpack.c.l.b16 %v943
    %v1152 = vunpack.c.h.b16 %v943
    %v1153 = vunpack.c.l.b16 %v944
    %v1154 = vunpack.c.l.b16 %v945
    %v1155 = vunpack.c.h.b16 %v945
    %v1156 = vunpack.c.l.b16 %v946
    %v1157 = vunpack.c.l.b16 %v947
    %v1158 = vunpack.c.h.b16 %v947
    %v1159 = vunpack.c.l.b16 %v948
    %v1160 = vunpack.c.l.b16 %v949
    %v1161 = vunpack.c.h.b16 %v949
    %v1162 = vunpack.c.l.b16 %v950
    %v1163 = vunpack.c.l.b16 %v951
    %v1164 = vunpack.c.h.b16 %v951
    %v1165 = vunpack.c.l.b16 %v952
    %v1166 = vunpack.c.l.b16 %v953
    %v1167 = vunpack.c.h.b16 %v953
    %v1168 = vunpack.c.l.b16 %v954
    %v1169 = vunpack.c.l.b16 %v955
    %v1170 = vunpack.c.h.b16 %v955
    %v1171 = vunpack.c.l.b16 %v956
    %v1172 = vunpack.c.l.b16 %v957
    %v1173 = vunpack.c.h.b16 %v957
    %v1174 = vunpack.c.l.b16 %v958
    %v1175 = vunpack.c.l.b16 %v959
    %v1176 = vunpack.c.h.b16 %v959
    %v1177 = vunpack.c.l.b16 %v960
    %v1178 = vunpack.c.l.b16 %v961
    %v1179 = vunpack.c.h.b16 %v961
    %v1180 = vunpack.c.l.b16 %v962
    %v1181 = vunpack.c.l.b16 %v963
    %v1182 = vunpack.c.h.b16 %v963
    %v1183 = vunpack.c.l.b16 %v964
    %v1184 = vunpack.c.l.b16 %v965
    %v1185 = vunpack.c.h.b16 %v965
    %v1186 = vunpack.c.l.b16 %v966
    %v1187 = vunpack.c.l.b16 %v967
    %v1188 = vunpack.c.h.b16 %v967
    %v1189 = vunpack.c.l.b16 %v968
    %v1190 = vunpack.c.l.b16 %v969
    %v1191 = vunpack.c.h.b16 %v969
    %v1192 = vunpack.c.l.b16 %v970
    %v1193 = vunpack.c.l.b16 %v971
    %v1194 = vunpack.c.h.b16 %v971
    %v1195 = vunpack.c.l.b16 %v972
    %v1196 = vunpack.c.l.b16 %v973
    %v1197 = vunpack.c.h.b16 %v973
    %v1198 = vunpack.c.l.b16 %v974
    %v1199 = vunpack.c.l.b16 %v975
    %v1200 = vunpack.c.h.b16 %v975
    %v1201 = vunpack.c.l.b16 %v976
    %v1202 = vunpack.c.l.b16 %v977
    %v1203 = vunpack.c.h.b16 %v977
    %v1204 = vunpack.c.l.b16 %v978
    %v1205 = vunpack.c.l.b16 %v979
    %v1206 = vunpack.c.h.b16 %v979
    %v1207 = vunpack.c.l.b16 %v980
    %v1208 = vunpack.c.l.b16 %v981
    %v1209 = vunpack.c.h.b16 %v981
    %v1210 = vunpack.c.l.b16 %v982
    %v1211 = vunpack.c.l.b16 %v983
    %v1212 = vunpack.c.h.b16 %v983
    %v1213 = vunpack.c.l.b16 %v984
    %v1214 = vunpack.c.l.b16 %v985
    %v1215 = vunpack.c.h.b16 %v985
    %v1216 = vunpack.c.l.b16 %v986
    %v1217 = vunpack.c.l.b16 %v987
    %v1218 = vunpack.c.h.b16 %v987
    %v1219 = vunpack.c.l.b16 %v988
    %v1220 = vunpack.c.l.b16 %v989
    %v1221 = vunpack.c.h.b16 %v989
    %v1222 = vunpack.c.l.b16 %v990
    %v1223 = vunpack.c.l.b16 %v991
    %v1224 = vunpack.c.h.b16 %v991
    %v1225 = vunpack.c.l.b16 %v992
    %v1226 = vunpack.c.l.b16 %v993
    %v1227 = vunpack.c.h.b16 %v993
    %v1228 = vunpack.c.l.b16 %v994
    %v1229 = vunpack.c.l.b16 %v995
    %v1230 = vunpack.c.h.b16 %v995
    %v1231 = vunpack.c.l.b16 %v996
    %v1232 = vunpack.c.l.b16 %v997
    %v1233 = vunpack.c.h.b16 %v997
    %v1234 = vunpack.c.l.b16 %v998
    %v1235 = vunpack.c.l.b16 %v999
    %v1236 = vunpack.c.h.b16 %v999
    %v1237 = vunpack.c.l.b16 %v1000
    %v1238 = vunpack.c.l.b16 %v1001
    %v1239 = vunpack.c.h.b16 %v1001
    %v1240 = vunpack.c.l.b16 %v1002
    %v1241 = vunpack.c.l.b16 %v1003
    %v1242 = vunpack.c.h.b16 %v1003
    %v1243 = vunpack.c.l.b16 %v1004
    %v1244 = vunpack.c.l.b16 %v1005
    %v1245 = vunpack.c.h.b16 %v1005
    %v1246 = vunpack.c.l.b16 %v1006
    %v1247 = vunpack.c.l.b16 %v1007
    %v1248 = vunpack.c.h.b16 %v1007
    %v1249 = vunpack.c.l.b16 %v1008
    %v1250 = vunpack.c.l.b16 %v1009
    %v1251 = vunpack.c.h.b16 %v1009
    %v1252 = vunpack.c.l.b16 %v1010
    %v1253 = vunpack.c.l.b16 %v1011
    %v1254 = vunpack.c.h.b16 %v1011
    %v1255 = vunpack.c.l.b16 %v1012
    %v1256 = vunpack.c.l.b16 %v1013
    %v1257 = vunpack.c.h.b16 %v1013
    %v1258 = vunpack.c.l.b16 %v1014
    %v1259 = vunpack.c.l.b16 %v1015
    %v1260 = vunpack.c.h.b16 %v1015
    %v1261 = vunpack.c.l.b16 %v1016
    %v1262 = vunpack.c.l.b16 %v1017
    %v1263 = vunpack.c.h.b16 %v1017
    %v1264 = vunpack.c.l.b16 %v1018
    %v1265 = vunpack.c.l.b16 %v1019
    %v1266 = vunpack.c.h.b16 %v1019
    %v1267 = vunpack.c.l.b16 %v1020
    %v1268 = vunpack.c.l.b16 %v1021
    %v1269 = vunpack.c.h.b16 %v1021
    %v1270 = vunpack.c.l.b16 %v1022
    %v1271 = vpack.c.b16 %v1130, %v1127
    %v1272 = vpack.c.b16 %v1131, %v1128
    %v1273 = vpack.c.b16 %v1132, %v1129
    %v1274 = vpack.c.b16 %v1136, %v1133
    %v1275 = vpack.c.b16 %v1137, %v1134
    %v1276 = vpack.c.b16 %v1138, %v1135
    %v1277 = vpack.c.b16 %v1142, %v1139
    %v1278 = vpack.c.b16 %v1143, %v1140
    %v1279 = vpack.c.b16 %v1144, %v1141
    %v1280 = vpack.c.b16 %v1148, %v1145
    %v1281 = vpack.c.b16 %v1149, %v1146
    %v1282 = vpack.c.b16 %v1150, %v1147
    %v1283 = vpack.c.b16 %v1154, %v1151
    %v1284 = vpack.c.b16 %v1155, %v1152
    %v1285 = vpack.c.b16 %v1156, %v1153
    %v1286 = vpack.c.b16 %v1160, %v1157
    %v1287 = vpack.c.b16 %v1161, %v1158
    %v1288 = vpack.c.b16 %v1162, %v1159
    %v1289 = vpack.c.b16 %v1166, %v1163
    %v1290 = vpack.c.b16 %v1167, %v1164
    %v1291 = vpack.c.b16 %v1168, %v1165
    %v1292 = vpack.c.b16 %v1172, %v1169
    %v1293 = vpack.c.b16 %v1173, %v1170
    %v1294 = vpack.c.b16 %v1174, %v1171
    %v1295 = vpack.c.b16 %v1178, %v1175
    %v1296 = vpack.c.b16 %v1179, %v1176
    %v1297 = vpack.c.b16 %v1180, %v1177
    %v1298 = vpack.c.b16 %v1184, %v1181
    %v1299 = vpack.c.b16 %v1185, %v1182
    %v1300 = vpack.c.b16 %v1186, %v1183
    %v1301 = vpack.c.b16 %v1190, %v1187
    %v1302 = vpack.c.b16 %v1191, %v1188
    %v1303 = vpack.c.b16 %v1192, %v1189
    %v1304 = vpack.c.b16 %v1196, %v1193
    %v1305 = vpack.c.b16 %v1197, %v1194
    %v1306 = vpack.c.b16 %v1198, %v1195
    %v1307 = vpack.c.b16 %v1202, %v1199
    %v1308 = vpack.c.b16 %v1203, %v1200
    %v1309 = vpack.c.b16 %v1204, %v1201
    %v1310 = vpack.c.b16 %v1208, %v1205
    %v1311 = vpack.c.b16 %v1209, %v1206
    %v1312 = vpack.c.b16 %v1210, %v1207
    %v1313 = vpack.c.b16 %v1214, %v1211
    %v1314 = vpack.c.b16 %v1215, %v1212
    %v1315 = vpack.c.b16 %v1216, %v1213
    %v1316 = vpack.c.b16 %v1220, %v1217
    %v1317 = vpack.c.b16 %v1221, %v1218
    %v1318 = vpack.c.b16 %v1222, %v1219
    %v1319 = vpack.c.b16 %v1226, %v1223
    %v1320 = vpack.c.b16 %v1227, %v1224
    %v1321 = vpack.c.b16 %v1228, %v1225
    %v1322 = vpack.c.b16 %v1232, %v1229
    %v1323 = vpack.c.b16 %v1233, %v1230
    %v1324 = vpack.c.b16 %v1234, %v1231
    %v1325 = vpack.c.b16 %v1238, %v1235
    %v1326 = vpack.c.b16 %v1239, %v1236
    %v1327 = vpack.c.b16 %v1240, %v1237
    %v1328 = vpack.c.b16 %v1244, %v1241
    %v1329 = vpack.c.b16 %v1245, %v1242
    %v1330 = vpack.c.b16 %v1246, %v1243
    %v1331 = vpack.c.b16 %v1250, %v1247
    %v1332 = vpack.c.b16 %v1251, %v1248
    %v1333 = vpack.c.b16 %v1252, %v1249
    %v1334 = vpack.c.b16 %v1256, %v1253
    %v1335 = vpack.c.b16 %v1257, %v1254
    %v1336 = vpack.c.b16 %v1258, %v1255
    %v1337 = vpack.c.b16 %v1262, %v1259
    %v1338 = vpack.c.b16 %v1263, %v1260
    %v1339 = vpack.c.b16 %v1264, %v1261
    %v1340 = vpack.c.b16 %v1268, %v1265
    %v1341 = vpack.c.b16 %v1269, %v1266
    %v1342 = vpack.c.b16 %v1270, %v1267
    %1415 = vmatpush.bf16.msra.mxu0 %v1292
    %1416 = vmatpush.bf16.msra.mxu0 %v1289
    %1417 = vmatpush.bf16.msra.mxu0 %v1286
    %1418 = vmatpush.bf16.msra.mxu0 %v1283
    %1419 = vmatpush.bf16.msra.mxu0 %v1280
    %1420 = vmatpush.bf16.msra.mxu0 %v1277
    %1421 = vmatpush.bf16.msra.mxu0 %v1274
    %1422 = vmatpush.bf16.msra.mxu0 %v1271
    %1423 = vmatmul.bf16.gmra.mxu0 %v924
    %v1424 = vpop.f32.mrf.mxu0
    %v1425 = vadd.f32 %v1025, %v1424
    %v1426 = vpop.f32.mrf.mxu0
    %1427 = vdwg.mxu0
    %1428 = vmatpush.bf16.msra.mxu0 %v1316
    %1429 = vmatpush.bf16.msra.mxu0 %v1313
    %1430 = vmatpush.bf16.msra.mxu0 %v1310
    %1431 = vmatpush.bf16.msra.mxu0 %v1307
    %1432 = vmatpush.bf16.msra.mxu0 %v1304
    %1433 = vmatpush.bf16.msra.mxu0 %v1301
    %1434 = vmatpush.bf16.msra.mxu0 %v1298
    %1435 = vmatpush.bf16.msra.mxu0 %v1295
    %1436 = vmatmul.bf16.gmra.mxu0 %v925
    %v1437 = vpop.f32.mrf.mxu0
    %v1438 = vadd.f32 %v1425, %v1437
    %v1439 = vpop.f32.mrf.mxu0
    %1440 = vdwg.mxu0
    %1441 = vmatpush.bf16.msra.mxu0 %v1340
    %1442 = vmatpush.bf16.msra.mxu0 %v1337
    %1443 = vmatpush.bf16.msra.mxu0 %v1334
    %1444 = vmatpush.bf16.msra.mxu0 %v1331
    %1445 = vmatpush.bf16.msra.mxu0 %v1328
    %1446 = vmatpush.bf16.msra.mxu0 %v1325
    %1447 = vmatpush.bf16.msra.mxu0 %v1322
    %1448 = vmatpush.bf16.msra.mxu0 %v1319
    %1449 = vmatmul.bf16.gmra.mxu0 %v926
    %v1450 = vpop.f32.mrf.mxu0
    %v1451 = vadd.f32 %v1438, %v1450
    %v1452 = vpop.f32.mrf.mxu0
    %1453 = vdwg.mxu0
    %1454 = vmatpush.bf16.msra.mxu0 %v1293
    %1455 = vmatpush.bf16.msra.mxu0 %v1290
    %1456 = vmatpush.bf16.msra.mxu0 %v1287
    %1457 = vmatpush.bf16.msra.mxu0 %v1284
    %1458 = vmatpush.bf16.msra.mxu0 %v1281
    %1459 = vmatpush.bf16.msra.mxu0 %v1278
    %1460 = vmatpush.bf16.msra.mxu0 %v1275
    %1461 = vmatpush.bf16.msra.mxu0 %v1272
    %1462 = vmatmul.bf16.gmra.mxu0 %v924
    %v1463 = vpop.f32.mrf.mxu0
    %v1464 = vadd.f32 %v1026, %v1463
    %v1465 = vpop.f32.mrf.mxu0
    %1466 = vdwg.mxu0
    %1467 = vmatpush.bf16.msra.mxu0 %v1317
    %1468 = vmatpush.bf16.msra.mxu0 %v1314
    %1469 = vmatpush.bf16.msra.mxu0 %v1311
    %1470 = vmatpush.bf16.msra.mxu0 %v1308
    %1471 = vmatpush.bf16.msra.mxu0 %v1305
    %1472 = vmatpush.bf16.msra.mxu0 %v1302
    %1473 = vmatpush.bf16.msra.mxu0 %v1299
    %1474 = vmatpush.bf16.msra.mxu0 %v1296
    %1475 = vmatmul.bf16.gmra.mxu0 %v925
    %v1476 = vpop.f32.mrf.mxu0
    %v1477 = vadd.f32 %v1464, %v1476
    %v1478 = vpop.f32.mrf.mxu0
    %1479 = vdwg.mxu0
    %1480 = vmatpush.bf16.msra.mxu0 %v1341
    %1481 = vmatpush.bf16.msra.mxu0 %v1338
    %1482 = vmatpush.bf16.msra.mxu0 %v1335
    %1483 = vmatpush.bf16.msra.mxu0 %v1332
    %1484 = vmatpush.bf16.msra.mxu0 %v1329
    %1485 = vmatpush.bf16.msra.mxu0 %v1326
    %1486 = vmatpush.bf16.msra.mxu0 %v1323
    %1487 = vmatpush.bf16.msra.mxu0 %v1320
    %1488 = vmatmul.bf16.gmra.mxu0 %v926
    %v1489 = vpop.f32.mrf.mxu0
    %v1490 = vadd.f32 %v1477, %v1489
    %v1491 = vpop.f32.mrf.mxu0
    %1492 = vdwg.mxu0
    %1493 = vmatpush.bf16.msra.mxu0 %v1294
    %1494 = vmatpush.bf16.msra.mxu0 %v1291
    %1495 = vmatpush.bf16.msra.mxu0 %v1288
    %1496 = vmatpush.bf16.msra.mxu0 %v1285
    %1497 = vmatpush.bf16.msra.mxu0 %v1282
    %1498 = vmatpush.bf16.msra.mxu0 %v1279
    %1499 = vmatpush.bf16.msra.mxu0 %v1276
    %1500 = vmatpush.bf16.msra.mxu0 %v1273
    %1501 = vmatmul.bf16.gmra.mxu0 %v924
    %v1502 = vpop.f32.mrf.mxu0
    %v1503 = vadd.f32 %v1027, %v1502
    %v1504 = vpop.f32.mrf.mxu0
    %1505 = vdwg.mxu0
    %1506 = vmatpush.bf16.msra.mxu0 %v1318
    %1507 = vmatpush.bf16.msra.mxu0 %v1315
    %1508 = vmatpush.bf16.msra.mxu0 %v1312
    %1509 = vmatpush.bf16.msra.mxu0 %v1309
    %1510 = vmatpush.bf16.msra.mxu0 %v1306
    %1511 = vmatpush.bf16.msra.mxu0 %v1303
    %1512 = vmatpush.bf16.msra.mxu0 %v1300
    %1513 = vmatpush.bf16.msra.mxu0 %v1297
    %1514 = vmatmul.bf16.gmra.mxu0 %v925
    %v1515 = vpop.f32.mrf.mxu0
    %v1516 = vadd.f32 %v1503, %v1515
    %v1517 = vpop.f32.mrf.mxu0
    %1518 = vdwg.mxu0
    %1519 = vmatpush.bf16.msra.mxu0 %v1342
    %1520 = vmatpush.bf16.msra.mxu0 %v1339
    %1521 = vmatpush.bf16.msra.mxu0 %v1336
    %1522 = vmatpush.bf16.msra.mxu0 %v1333
    %1523 = vmatpush.bf16.msra.mxu0 %v1330
    %1524 = vmatpush.bf16.msra.mxu0 %v1327
    %1525 = vmatpush.bf16.msra.mxu0 %v1324
    %1526 = vmatpush.bf16.msra.mxu0 %v1321
    %1527 = vmatmul.bf16.gmra.mxu0 %v926
    %v1528 = vpop.f32.mrf.mxu0
    %v1529 = vadd.f32 %v1516, %v1528
    %v1530 = vpop.f32.mrf.mxu0
    %1531 = vdwg.mxu0
    %v1532 = vmax.f32 %v1451, 0.0
    %v1533 = vmax.f32 %v1490, 0.0
    %v1534 = vmax.f32 %v1529, 0.0
    %v1535 = vpack.c.bf16 %v1532, %v1532
    %v1536 = vpack.c.bf16 %v1533, %v1533
    %v1537 = vpack.c.bf16 %v1534, %v1534
    %v1538 = vld [vmem:[#allocation10] sm:$0xff]
    %v1539 = vld [vmem:[#allocation10 + $0x8] sm:$0xff]
    %v1540 = vld [vmem:[#allocation10 + $0x10] sm:$0xff]
    %v1541 = vld [vmem:[#allocation10 + $0x18] sm:$0xff]
    %v1542 = vld [vmem:[#allocation10 + $0x20] sm:$0xff]
    %v1543 = vld [vmem:[#allocation10 + $0x28] sm:$0xff]
    %v1544 = vld [vmem:[#allocation10 + $0x30] sm:$0xff]
    %v1545 = vld [vmem:[#allocation10 + $0x38] sm:$0xff]
    %v1546 = vld [vmem:[#allocation10 + $0x40] sm:$0xff]
    %v1547 = vld [vmem:[#allocation10 + $0x48] sm:$0xff]
    %v1548 = vld [vmem:[#allocation10 + $0x50] sm:$0xff]
    %v1549 = vld [vmem:[#allocation10 + $0x58] sm:$0xff]
    %v1550 = vld [vmem:[#allocation10 + $0x60] sm:$0xff]
    %v1551 = vld [vmem:[#allocation10 + $0x68] sm:$0xff]
    %v1552 = vld [vmem:[#allocation10 + $0x70] sm:$0xff]
    %v1553 = vld [vmem:[#allocation10 + $0x78] sm:$0xff]
    %v1554 = vld [vmem:[#allocation10 + $0x80] sm:$0xff]
    %v1555 = vld [vmem:[#allocation10 + $0x88] sm:$0xff]
    %v1556 = vld [vmem:[#allocation10 + $0x90] sm:$0xff]
    %v1557 = vld [vmem:[#allocation10 + $0x98] sm:$0xff]
    %v1558 = vld [vmem:[#allocation10 + $0xa0] sm:$0xff]
    %v1559 = vld [vmem:[#allocation10 + $0xa8] sm:$0xff]
    %v1560 = vld [vmem:[#allocation10 + $0xb0] sm:$0xff]
    %v1561 = vld [vmem:[#allocation10 + $0xb8] sm:$0xff]
    %v1562 = vld [vmem:[#allocation10 + $0xc0] sm:$0xff]
    %v1563 = vld [vmem:[#allocation10 + $0xc8] sm:$0xff]
    %v1564 = vld [vmem:[#allocation10 + $0xd0] sm:$0xff]
    %v1565 = vld [vmem:[#allocation10 + $0xd8] sm:$0xff]
    %v1566 = vld [vmem:[#allocation10 + $0xe0] sm:$0xff]
    %v1567 = vld [vmem:[#allocation10 + $0xe8] sm:$0xff]
    %v1568 = vld [vmem:[#allocation10 + $0xf0] sm:$0xff]
    %v1569 = vld [vmem:[#allocation10 + $0xf8] sm:$0xff]
    %v1570 = vld [vmem:[#allocation10 + $0x100] sm:$0xff]
    %v1571 = vld [vmem:[#allocation10 + $0x108] sm:$0xff]
    %v1572 = vld [vmem:[#allocation10 + $0x110] sm:$0xff]
    %v1573 = vld [vmem:[#allocation10 + $0x118] sm:$0xff]
    %v1574 = vld [vmem:[#allocation10 + $0x120] sm:$0xff]
    %v1575 = vld [vmem:[#allocation10 + $0x128] sm:$0xff]
    %v1576 = vld [vmem:[#allocation10 + $0x130] sm:$0xff]
    %v1577 = vld [vmem:[#allocation10 + $0x138] sm:$0xff]
    %v1578 = vld [vmem:[#allocation10 + $0x140] sm:$0xff]
    %v1579 = vld [vmem:[#allocation10 + $0x148] sm:$0xff]
    %v1580 = vld [vmem:[#allocation10 + $0x150] sm:$0xff]
    %v1581 = vld [vmem:[#allocation10 + $0x158] sm:$0xff]
    %v1582 = vld [vmem:[#allocation10 + $0x160] sm:$0xff]
    %v1583 = vld [vmem:[#allocation10 + $0x168] sm:$0xff]
    %v1584 = vld [vmem:[#allocation10 + $0x170] sm:$0xff]
    %v1585 = vld [vmem:[#allocation10 + $0x178] sm:$0xff]
    %v1586 = vld [vmem:[%s6] sm:$0x3]
    %v1588 = vperm.slane %v1586, 0
    %v1589 = vperm.slane %v1586, 1
    %v1640 = vunpack.c.l.b16 %v1538
    %v1641 = vunpack.c.h.b16 %v1538
    %v1642 = vunpack.c.l.b16 %v1539
    %v1643 = vunpack.c.h.b16 %v1539
    %v1644 = vunpack.c.l.b16 %v1540
    %v1645 = vunpack.c.h.b16 %v1540
    %v1646 = vunpack.c.l.b16 %v1541
    %v1647 = vunpack.c.h.b16 %v1541
    %v1648 = vunpack.c.l.b16 %v1542
    %v1649 = vunpack.c.h.b16 %v1542
    %v1650 = vunpack.c.l.b16 %v1543
    %v1651 = vunpack.c.h.b16 %v1543
    %v1652 = vunpack.c.l.b16 %v1544
    %v1653 = vunpack.c.h.b16 %v1544
    %v1654 = vunpack.c.l.b16 %v1545
    %v1655 = vunpack.c.h.b16 %v1545
    %v1656 = vunpack.c.l.b16 %v1546
    %v1657 = vunpack.c.h.b16 %v1546
    %v1658 = vunpack.c.l.b16 %v1547
    %v1659 = vunpack.c.h.b16 %v1547
    %v1660 = vunpack.c.l.b16 %v1548
    %v1661 = vunpack.c.h.b16 %v1548
    %v1662 = vunpack.c.l.b16 %v1549
    %v1663 = vunpack.c.h.b16 %v1549
    %v1664 = vunpack.c.l.b16 %v1550
    %v1665 = vunpack.c.h.b16 %v1550
    %v1666 = vunpack.c.l.b16 %v1551
    %v1667 = vunpack.c.h.b16 %v1551
    %v1668 = vunpack.c.l.b16 %v1552
    %v1669 = vunpack.c.h.b16 %v1552
    %v1670 = vunpack.c.l.b16 %v1553
    %v1671 = vunpack.c.h.b16 %v1553
    %v1672 = vunpack.c.l.b16 %v1554
    %v1673 = vunpack.c.h.b16 %v1554
    %v1674 = vunpack.c.l.b16 %v1555
    %v1675 = vunpack.c.h.b16 %v1555
    %v1676 = vunpack.c.l.b16 %v1556
    %v1677 = vunpack.c.h.b16 %v1556
    %v1678 = vunpack.c.l.b16 %v1557
    %v1679 = vunpack.c.h.b16 %v1557
    %v1680 = vunpack.c.l.b16 %v1558
    %v1681 = vunpack.c.h.b16 %v1558
    %v1682 = vunpack.c.l.b16 %v1559
    %v1683 = vunpack.c.h.b16 %v1559
    %v1684 = vunpack.c.l.b16 %v1560
    %v1685 = vunpack.c.h.b16 %v1560
    %v1686 = vunpack.c.l.b16 %v1561
    %v1687 = vunpack.c.h.b16 %v1561
    %v1688 = vunpack.c.l.b16 %v1562
    %v1689 = vunpack.c.h.b16 %v1562
    %v1690 = vunpack.c.l.b16 %v1563
    %v1691 = vunpack.c.h.b16 %v1563
    %v1692 = vunpack.c.l.b16 %v1564
    %v1693 = vunpack.c.h.b16 %v1564
    %v1694 = vunpack.c.l.b16 %v1565
    %v1695 = vunpack.c.h.b16 %v1565
    %v1696 = vunpack.c.l.b16 %v1566
    %v1697 = vunpack.c.h.b16 %v1566
    %v1698 = vunpack.c.l.b16 %v1567
    %v1699 = vunpack.c.h.b16 %v1567
    %v1700 = vunpack.c.l.b16 %v1568
    %v1701 = vunpack.c.h.b16 %v1568
    %v1702 = vunpack.c.l.b16 %v1569
    %v1703 = vunpack.c.h.b16 %v1569
    %v1704 = vunpack.c.l.b16 %v1570
    %v1705 = vunpack.c.h.b16 %v1570
    %v1706 = vunpack.c.l.b16 %v1571
    %v1707 = vunpack.c.h.b16 %v1571
    %v1708 = vunpack.c.l.b16 %v1572
    %v1709 = vunpack.c.h.b16 %v1572
    %v1710 = vunpack.c.l.b16 %v1573
    %v1711 = vunpack.c.h.b16 %v1573
    %v1712 = vunpack.c.l.b16 %v1574
    %v1713 = vunpack.c.h.b16 %v1574
    %v1714 = vunpack.c.l.b16 %v1575
    %v1715 = vunpack.c.h.b16 %v1575
    %v1716 = vunpack.c.l.b16 %v1576
    %v1717 = vunpack.c.h.b16 %v1576
    %v1718 = vunpack.c.l.b16 %v1577
    %v1719 = vunpack.c.h.b16 %v1577
    %v1720 = vunpack.c.l.b16 %v1578
    %v1721 = vunpack.c.h.b16 %v1578
    %v1722 = vunpack.c.l.b16 %v1579
    %v1723 = vunpack.c.h.b16 %v1579
    %v1724 = vunpack.c.l.b16 %v1580
    %v1725 = vunpack.c.h.b16 %v1580
    %v1726 = vunpack.c.l.b16 %v1581
    %v1727 = vunpack.c.h.b16 %v1581
    %v1728 = vunpack.c.l.b16 %v1582
    %v1729 = vunpack.c.h.b16 %v1582
    %v1730 = vunpack.c.l.b16 %v1583
    %v1731 = vunpack.c.h.b16 %v1583
    %v1732 = vunpack.c.l.b16 %v1584
    %v1733 = vunpack.c.h.b16 %v1584
    %v1734 = vunpack.c.l.b16 %v1585
    %v1735 = vunpack.c.h.b16 %v1585
    %v1736 = vpack.c.b16 %v1642, %v1640
    %v1737 = vpack.c.b16 %v1643, %v1641
    %v1738 = vpack.c.b16 %v1646, %v1644
    %v1739 = vpack.c.b16 %v1647, %v1645
    %v1740 = vpack.c.b16 %v1650, %v1648
    %v1741 = vpack.c.b16 %v1651, %v1649
    %v1742 = vpack.c.b16 %v1654, %v1652
    %v1743 = vpack.c.b16 %v1655, %v1653
    %v1744 = vpack.c.b16 %v1658, %v1656
    %v1745 = vpack.c.b16 %v1659, %v1657
    %v1746 = vpack.c.b16 %v1662, %v1660
    %v1747 = vpack.c.b16 %v1663, %v1661
    %v1748 = vpack.c.b16 %v1666, %v1664
    %v1749 = vpack.c.b16 %v1667, %v1665
    %v1750 = vpack.c.b16 %v1670, %v1668
    %v1751 = vpack.c.b16 %v1671, %v1669
    %v1752 = vpack.c.b16 %v1674, %v1672
    %v1753 = vpack.c.b16 %v1675, %v1673
    %v1754 = vpack.c.b16 %v1678, %v1676
    %v1755 = vpack.c.b16 %v1679, %v1677
    %v1756 = vpack.c.b16 %v1682, %v1680
    %v1757 = vpack.c.b16 %v1683, %v1681
    %v1758 = vpack.c.b16 %v1686, %v1684
    %v1759 = vpack.c.b16 %v1687, %v1685
    %v1760 = vpack.c.b16 %v1690, %v1688
    %v1761 = vpack.c.b16 %v1691, %v1689
    %v1762 = vpack.c.b16 %v1694, %v1692
    %v1763 = vpack.c.b16 %v1695, %v1693
    %v1764 = vpack.c.b16 %v1698, %v1696
    %v1765 = vpack.c.b16 %v1699, %v1697
    %v1766 = vpack.c.b16 %v1702, %v1700
    %v1767 = vpack.c.b16 %v1703, %v1701
    %v1768 = vpack.c.b16 %v1706, %v1704
    %v1769 = vpack.c.b16 %v1707, %v1705
    %v1770 = vpack.c.b16 %v1710, %v1708
    %v1771 = vpack.c.b16 %v1711, %v1709
    %v1772 = vpack.c.b16 %v1714, %v1712
    %v1773 = vpack.c.b16 %v1715, %v1713
    %v1774 = vpack.c.b16 %v1718, %v1716
    %v1775 = vpack.c.b16 %v1719, %v1717
    %v1776 = vpack.c.b16 %v1722, %v1720
    %v1777 = vpack.c.b16 %v1723, %v1721
    %v1778 = vpack.c.b16 %v1726, %v1724
    %v1779 = vpack.c.b16 %v1727, %v1725
    %v1780 = vpack.c.b16 %v1730, %v1728
    %v1781 = vpack.c.b16 %v1731, %v1729
    %v1782 = vpack.c.b16 %v1734, %v1732
    %v1783 = vpack.c.b16 %v1735, %v1733
    %1832 = vmatpush.bf16.msra.mxu0 %v1750
    %1833 = vmatpush.bf16.msra.mxu0 %v1748
    %1834 = vmatpush.bf16.msra.mxu0 %v1746
    %1835 = vmatpush.bf16.msra.mxu0 %v1744
    %1836 = vmatpush.bf16.msra.mxu0 %v1742
    %1837 = vmatpush.bf16.msra.mxu0 %v1740
    %1838 = vmatpush.bf16.msra.mxu0 %v1738
    %1839 = vmatpush.bf16.msra.mxu0 %v1736
    %1840 = vmatmul.bf16.gmra.mxu0 %v1535
    %v1841 = vpop.f32.mrf.mxu0
    %v1842 = vadd.f32 %v1588, %v1841
    %v1843 = vpop.f32.mrf.mxu0
    %1844 = vdwg.mxu0
    %1845 = vmatpush.bf16.msra.mxu0 %v1766
    %1846 = vmatpush.bf16.msra.mxu0 %v1764
    %1847 = vmatpush.bf16.msra.mxu0 %v1762
    %1848 = vmatpush.bf16.msra.mxu0 %v1760
    %1849 = vmatpush.bf16.msra.mxu0 %v1758
    %1850 = vmatpush.bf16.msra.mxu0 %v1756
    %1851 = vmatpush.bf16.msra.mxu0 %v1754
    %1852 = vmatpush.bf16.msra.mxu0 %v1752
    %1853 = vmatmul.bf16.gmra.mxu0 %v1536
    %v1854 = vpop.f32.mrf.mxu0
    %v1855 = vadd.f32 %v1842, %v1854
    %v1856 = vpop.f32.mrf.mxu0
    %1857 = vdwg.mxu0
    %1858 = vmatpush.bf16.msra.mxu0 %v1782
    %1859 = vmatpush.bf16.msra.mxu0 %v1780
    %1860 = vmatpush.bf16.msra.mxu0 %v1778
    %1861 = vmatpush.bf16.msra.mxu0 %v1776
    %1862 = vmatpush.bf16.msra.mxu0 %v1774
    %1863 = vmatpush.bf16.msra.mxu0 %v1772
    %1864 = vmatpush.bf16.msra.mxu0 %v1770
    %1865 = vmatpush.bf16.msra.mxu0 %v1768
    %1866 = vmatmul.bf16.gmra.mxu0 %v1537
    %v1867 = vpop.f32.mrf.mxu0
    %v1868 = vadd.f32 %v1855, %v1867
    %v1869 = vpop.f32.mrf.mxu0
    %1870 = vdwg.mxu0
    %1871 = vmatpush.bf16.msra.mxu0 %v1751
    %1872 = vmatpush.bf16.msra.mxu0 %v1749
    %1873 = vmatpush.bf16.msra.mxu0 %v1747
    %1874 = vmatpush.bf16.msra.mxu0 %v1745
    %1875 = vmatpush.bf16.msra.mxu0 %v1743
    %1876 = vmatpush.bf16.msra.mxu0 %v1741
    %1877 = vmatpush.bf16.msra.mxu0 %v1739
    %1878 = vmatpush.bf16.msra.mxu0 %v1737
    %1879 = vmatmul.bf16.gmra.mxu0 %v1535
    %v1880 = vpop.f32.mrf.mxu0
    %v1881 = vadd.f32 %v1589, %v1880
    %v1882 = vpop.f32.mrf.mxu0
    %1883 = vdwg.mxu0
    %1884 = vmatpush.bf16.msra.mxu0 %v1767
    %1885 = vmatpush.bf16.msra.mxu0 %v1765
    %1886 = vmatpush.bf16.msra.mxu0 %v1763
    %1887 = vmatpush.bf16.msra.mxu0 %v1761
    %1888 = vmatpush.bf16.msra.mxu0 %v1759
    %1889 = vmatpush.bf16.msra.mxu0 %v1757
    %1890 = vmatpush.bf16.msra.mxu0 %v1755
    %1891 = vmatpush.bf16.msra.mxu0 %v1753
    %1892 = vmatmul.bf16.gmra.mxu0 %v1536
    %v1893 = vpop.f32.mrf.mxu0
    %v1894 = vadd.f32 %v1881, %v1893
    %v1895 = vpop.f32.mrf.mxu0
    %1896 = vdwg.mxu0
    %1897 = vmatpush.bf16.msra.mxu0 %v1783
    %1898 = vmatpush.bf16.msra.mxu0 %v1781
    %1899 = vmatpush.bf16.msra.mxu0 %v1779
    %1900 = vmatpush.bf16.msra.mxu0 %v1777
    %1901 = vmatpush.bf16.msra.mxu0 %v1775
    %1902 = vmatpush.bf16.msra.mxu0 %v1773
    %1903 = vmatpush.bf16.msra.mxu0 %v1771
    %1904 = vmatpush.bf16.msra.mxu0 %v1769
    %1905 = vmatmul.bf16.gmra.mxu0 %v1537
    %v1906 = vpop.f32.mrf.mxu0
    %v1907 = vadd.f32 %v1894, %v1906
    %v1908 = vpop.f32.mrf.mxu0
    %1909 = vdwg.mxu0
    %1910 = vst [vmem:[#allocation11] sm:$0xff] %v1868
    %1911 = vst [vmem:[#allocation11 + $0x8] sm:$0xff] %v1907
    // Predicated region
    $region50: #{tpu_custom_call.1} parent=1 // pred_check
      _
    $region51: #{tpu_custom_call.1} parent=1 // pred_check_branch
      %1913 = sbr.rel (0) target = $region53
    $region52: #{tpu_custom_call.1} parent=1 // pred_region
      %1915 = vsyncadd [#allocation4], 0
      %s1917 = sshll.u32 [#allocation11], 4
      %s1918 = int_to_ptr.vmem [resolvable:$true] %s1917
      %s1919 = sshll.u32 %s7, 4
      %s1920 = int_to_ptr.hbm [resolvable:$true] %s1919
      %1922 = dma.vmem_to_hbm [thread:$0]  %s1918, 256, %s1920, [#allocation4]
    $region53: #{tpu_custom_call.1} parent=1 // pred_fallthru
      _
    // Predicated region
    $region54: #{tpu_custom_call.1} parent=1 // pred_check
      _
    $region55: #{tpu_custom_call.1} parent=1 // pred_check_branch
      %1924 = sbr.rel (0) target = $region57
    $region56: #{tpu_custom_call.1} parent=1 // pred_region
      %1926 = dma.done [#allocation4], 256
    $region57: #{tpu_custom_call.1} parent=1 // pred_fallthru
      _
    %1927 = vsyncpa [#allocation3], 1
    %1928 = vsyncpa [#allocation6], 1
    %1929 = vsyncpa [#allocation9], 1
    %1930 = vsyncpa [#allocation4], 1

</llo_original>
